<compile_context>
chip_gen: v7x
topology: tpu7x:2x2x1
jax: 0.10.0
libtpu: 0.0.40
codegen_flags: <defaults>
</compile_context>

<pallas_src>
import jax
import jax.numpy as jnp
from jax import lax
from jax.experimental import pallas as pl
from jax.experimental.pallas import tpu as pltpu


def _round_up(x, m):
    return ((x + m - 1) // m) * m


def _make_lstm1_kernel(T, Tt, H, needs_mask, unroll):
    """Factory closing over static config (seq len, time tile, hidden, mask, unroll)."""

    def kernel(gx0_ref,               # (Tt, Bb, 4H) bf16  streamed x@Wx0+b0, gates [i,f,o,g]
               wh0_ref,               # (H, 4H)  bf16  layer-0 recurrent weights
               wx1_ref, wh1_ref,      # (H, 4H), (H, 4H) bf16  layer-1 weights (split, no concat)
               b1_ref,                # (1, 4H)  f32   layer-1 bias row
               wfc_ref, bfc_ref,      # (2H, Cp) bf16, (1, Cp) f32
               out_ref,               # (Bb, Cp) f32
               h0_ref, c0_ref, h1_ref, c1_ref):   # (Bb, H) f32 scratch, persist across grid
        t_chunk = pl.program_id(1)

        @pl.when(t_chunk == 0)
        def _():
            h0_ref[...] = jnp.zeros_like(h0_ref)
            c0_ref[...] = jnp.zeros_like(c0_ref)
            h1_ref[...] = jnp.zeros_like(h1_ref)
            c1_ref[...] = jnp.zeros_like(c1_ref)

        # Hoist weight loads out of the recurrence.
        wh0 = wh0_ref[...]
        wx1 = wx1_ref[...]
        wh1 = wh1_ref[...]
        b1 = b1_ref[...]              # (1, 4H) row; broadcast happens in the add (no pinned (Bb,4H))

        def activations(g):
            # gate order [i, f, o, g] -> two contiguous activation regions
            sig = jax.nn.sigmoid(g[:, :3 * H])
            return sig[:, 0:H], sig[:, H:2 * H], sig[:, 2 * H:3 * H], jnp.tanh(g[:, 3 * H:])

        def step(t, carry):
            h0, c0, h1, c1 = carry
            # layer 0: input projection precomputed; only the recurrent matmul remains.
            g0 = gx0_ref[t].astype(jnp.float32) + jnp.dot(
                h0.astype(jnp.bfloat16), wh0, preferred_element_type=jnp.float32)
            i0, f0, o0, gg0 = activations(g0)
            c0n = f0 * c0 + i0 * gg0
            h0n = o0 * jnp.tanh(c0n)
            # layer 1: two accumulating dots -> no per-step lane concat on the crit path.
            g1 = (jnp.dot(h0n.astype(jnp.bfloat16), wx1,
                          preferred_element_type=jnp.float32)
                  + jnp.dot(h1.astype(jnp.bfloat16), wh1,
                            preferred_element_type=jnp.float32)
                  + b1)
            i1, f1, o1, gg1 = activations(g1)
            c1n = f1 * c1 + i1 * gg1
            h1n = o1 * jnp.tanh(c1n)
            if needs_mask:
                # Last chunk may be padded past T; keep old state on padded steps.
                valid = (t_chunk * Tt + t) < T
                h0n = jnp.where(valid, h0n, h0)
                c0n = jnp.where(valid, c0n, c0)
                h1n = jnp.where(valid, h1n, h1)
                c1n = jnp.where(valid, c1n, c1)
            return (h0n, c0n, h1n, c1n)

        carry = (h0_ref[...], c0_ref[...], h1_ref[...], c1_ref[...])
        h0, c0, h1, c1 = lax.fori_loop(0, Tt, step, carry, unroll=unroll)

        h0_ref[...] = h0
        c0_ref[...] = c0
        h1_ref[...] = h1
        c1_ref[...] = c1

        @pl.when(t_chunk == pl.num_programs(1) - 1)
        def _():
            # hn.transpose(0,1).reshape(B, 2H) @ wfc  ==  h0 @ wfc[:H] + h1 @ wfc[H:]
            wfc = wfc_ref[...]
            out = (jnp.dot(h0.astype(jnp.bfloat16), wfc[:H, :],
                           preferred_element_type=jnp.float32)
                   + jnp.dot(h1.astype(jnp.bfloat16), wfc[H:, :],
                             preferred_element_type=jnp.float32)
                   + bfc_ref[...])
            out_ref[...] = out.astype(out_ref.dtype)

    return kernel


def lstm1_forward(x, params):
    """x: (B, T, input_size) float32. Returns (B, num_classes)."""
    (wx0, wh0, b0, wx1, wh1, b1, wfc, bfc) = params
    B, T, D = x.shape
    H = wh0.shape[0]
    C = wfc.shape[1]

    # Batch-parallel grid axis: 2 blocks when B >= 16 (exploits v7x's 2nd TensorCore;
    # on 1-TC v5e/v6e it is just a sequential outer loop).
    nb = 2 if B >= 16 else 1
    align = 16 if nb == 1 else 32       # bf16-friendly sublane alignment per batch block
    Bp = _round_up(B, align)
    Bb = Bp // nb
    Cp = _round_up(C, 128)              # lane-dense FC output

    # Reorder PyTorch gate blocks [i|f|g|o] -> [i|f|o|g] (contiguous sigmoid/tanh regions).
    def perm(w):
        return jnp.concatenate([w[..., :2 * H], w[..., 3 * H:], w[..., 2 * H:3 * H]],
                               axis=-1)

    wx0p, wh0p, b0p = perm(wx0), perm(wh0), perm(b0)
    wx1p, wh1p, b1p = perm(wx1), perm(wh1), perm(b1)

    xp = jnp.pad(x, ((0, Bp - B), (0, 0), (0, 0)))
    wfc_p = jnp.pad(wfc, ((0, 0), (0, Cp - C)))
    bfc_p = jnp.pad(bfc, ((0, 0), (0, Cp - C)))

    # Layer-0 input projection hoisted out of the recurrence: one big GEMM over all
    # timesteps, emitted time-major; stored bf16 (halves the HBM->VMEM stream).
    gx0 = (jnp.einsum('btd,dg->tbg', xp, wx0p) + b0p).astype(jnp.bfloat16)   # (T, Bp, 4H)

    # Time tile: stream gx0 in ~4 MiB chunks (Pallas double-buffers them over the
    # recurrence) instead of making the whole array VMEM-resident.
    bytes_per_step = Bb * 4 * H * 2                      # bf16
    Tt = max(1, min(T, (4 << 20) // bytes_per_step))
    num_chunks = pl.cdiv(T, Tt)
    T_pad = num_chunks * Tt
    needs_mask = (T_pad != T)
    if needs_mask:
        gx0 = jnp.pad(gx0, ((0, T_pad - T), (0, 0), (0, 0)))

    # Unroll gated on state/vreg footprint (avoid spills at production Bb*H).
    if Tt <= 16:
        unroll = True
    elif Bb * H >= 8192:
        unroll = 2
    elif Bb * H >= 4096:
        unroll = 4
    else:
        unroll = 8

    # bf16 MXU operands; accumulation and all cell math stay f32 in the kernel.
    wh0_b = wh0p.astype(jnp.bfloat16)
    wx1_b = wx1p.astype(jnp.bfloat16)
    wh1_b = wh1p.astype(jnp.bfloat16)
    wfc_b = wfc_p.astype(jnp.bfloat16)

    # Explicit VMEM budget with headroom (v5e default scoped is 16 MiB; v7x physical 64 MiB).
    resident_bytes = ((wh0_b.size + wx1_b.size + wh1_b.size + wfc_b.size) * 2
                      + (b1p.size + bfc_p.size) * 4
                      + Bb * Cp * 4            # output block
                      + 4 * Bb * H * 4)        # state scratch
    vmem_needed = 2 * (Tt * Bb * 4 * H * 2) + 2 * resident_bytes
    vmem_limit = int(min(max(vmem_needed + (2 << 20), 16 << 20), 48 << 20))

    flops = int(T * Bp * 2 * H * 4 * H * 3          # recurrent + 2 layer-1 dots per step
                + Bp * 2 * (2 * H) * Cp)            # fc
    transcendentals = int(10 * T * Bp * H)
    bytes_accessed = int(gx0.size * 2
                         + (wh0_b.size + wx1_b.size + wh1_b.size + wfc_b.size) * 2
                         + (b1p.size + bfc_p.size) * 4 + Bp * Cp * 4)
    cost = pl.CostEstimate(flops=flops, transcendentals=transcendentals,
                           bytes_accessed=bytes_accessed)

    kernel = _make_lstm1_kernel(T, Tt, H, needs_mask, unroll)

    out_p = pl.pallas_call(
        kernel,
        out_shape=jax.ShapeDtypeStruct((Bp, Cp), jnp.float32),
        grid_spec=pltpu.PrefetchScalarGridSpec(
            num_scalar_prefetch=0,
            grid=(nb, num_chunks),
            in_specs=[
                pl.BlockSpec((Tt, Bb, 4 * H), lambda b, t: (t, b, 0)),   # streamed gx0
                pl.BlockSpec((H, 4 * H), lambda b, t: (0, 0)),           # wh0 (resident)
                pl.BlockSpec((H, 4 * H), lambda b, t: (0, 0)),           # wx1
                pl.BlockSpec((H, 4 * H), lambda b, t: (0, 0)),           # wh1
                pl.BlockSpec((1, 4 * H), lambda b, t: (0, 0)),           # b1
                pl.BlockSpec((2 * H, Cp), lambda b, t: (0, 0)),          # wfc
                pl.BlockSpec((1, Cp), lambda b, t: (0, 0)),              # bfc
            ],
            out_specs=pl.BlockSpec((Bb, Cp), lambda b, t: (b, 0)),
            scratch_shapes=[
                pltpu.VMEM((Bb, H), jnp.float32),    # h0
                pltpu.VMEM((Bb, H), jnp.float32),    # c0
                pltpu.VMEM((Bb, H), jnp.float32),    # h1
                pltpu.VMEM((Bb, H), jnp.float32),    # c1
            ],
        ),
        compiler_params=pltpu.CompilerParams(
            dimension_semantics=("parallel", "arbitrary"),
            vmem_limit_bytes=vmem_limit),
        cost_estimate=cost,
    )(gx0, wh0_b, wx1_b, wh1_b, b1p, wfc_b, bfc_p)
    return out_p[:B, :C]


def make_params(key, input_size, hidden_size, num_layers, num_classes):
    assert num_layers == 2, "kernel is written for num_layers == 2"
    H = hidden_size
    scale = 1.0 / jnp.sqrt(jnp.float32(H))
    ks = jax.random.split(key, 10)

    def u(k, shape):
        return jax.random.uniform(k, shape, jnp.float32, -scale, scale)

    # layer 0 (PyTorch gate order [i|f|g|o], biases b_ih + b_hh folded)
    wx0 = u(ks[0], (input_size, 4 * H))
    wh0 = u(ks[1], (H, 4 * H))
    b0 = u(ks[2], (1, 4 * H)) + u(ks[3], (1, 4 * H))
    # layer 1
    wx1 = u(ks[4], (H, 4 * H))
    wh1 = u(ks[5], (H, 4 * H))
    b1 = u(ks[6], (1, 4 * H)) + u(ks[7], (1, 4 * H))
    # fc
    wfc = u(ks[8], (num_layers * H, num_classes))
    bfc = u(ks[9], (1, num_classes))
    return (wx0, wh0, b0, wx1, wh1, b1, wfc, bfc)


def lstm1_reference(x, params):
    """Pure-JAX f32 reference of the PyTorch forward (original gate order)."""
    (wx0, wh0, b0, wx1, wh1, b1, wfc, bfc) = params
    B, T, _ = x.shape
    H = wh0.shape[0]

    def cell(x_t, h, c, wx, wh, b):
        g = x_t @ wx + h @ wh + b
        i = jax.nn.sigmoid(g[:, 0:H])
        f = jax.nn.sigmoid(g[:, H:2 * H])
        gg = jnp.tanh(g[:, 2 * H:3 * H])
        o = jax.nn.sigmoid(g[:, 3 * H:4 * H])
        c = f * c + i * gg
        return o * jnp.tanh(c), c

    h0 = c0 = h1 = c1 = jnp.zeros((B, H), jnp.float32)
    for t in range(T):
        h0, c0 = cell(x[:, t, :], h0, c0, wx0, wh0, b0)
        h1, c1 = cell(h0, h1, c1, wx1, wh1, b1)
    hn = jnp.concatenate([h0, h1], axis=-1)
    return hn @ wfc + bfc


if __name__ == "__main__":
    # small shapes consistent with the module
    batch, seq, input_size, hidden_size, num_layers, num_classes = 2, 8, 4, 32, 2, 5

    key = jax.random.PRNGKey(0)
    k_x, k_p = jax.random.split(key)
    x = jax.random.normal(k_x, (batch, seq, input_size), jnp.float32)
    params = make_params(k_p, input_size, hidden_size, num_layers, num_classes)

    out = lstm1_forward(x, params)
    out = jax.block_until_ready(out)

    ref = lstm1_reference(x, params)
    assert out.shape == (batch, num_classes)
    # bf16 MXU operands (f32 accumulation / f32 cell math) -> looser tolerance vs f32 ref.
    assert jnp.allclose(out, ref, atol=5e-2, rtol=5e-2), "mismatch vs reference"

    print("KERNEL_OK")
</pallas_src>

<mosaic_0001>
module attributes {stable_mosaic.version = 11 : i64} {
  func.func @kernel(%arg0: i32, %arg1: i32, %arg2: memref<8x16x128xbf16, #tpu.memory_space<vmem>>, %arg3: memref<32x128xbf16, #tpu.memory_space<vmem>>, %arg4: memref<32x128xbf16, #tpu.memory_space<vmem>>, %arg5: memref<32x128xbf16, #tpu.memory_space<vmem>>, %arg6: memref<1x128xf32, #tpu.memory_space<vmem>>, %arg7: memref<64x128xbf16, #tpu.memory_space<vmem>>, %arg8: memref<1x128xf32, #tpu.memory_space<vmem>>, %arg9: memref<16x128xf32, #tpu.memory_space<vmem>>, %arg10: memref<16x32xf32, #tpu.memory_space<vmem>>, %arg11: memref<16x32xf32, #tpu.memory_space<vmem>>, %arg12: memref<16x32xf32, #tpu.memory_space<vmem>>, %arg13: memref<16x32xf32, #tpu.memory_space<vmem>>) attributes {dimension_semantics = [#tpu.dimension_semantics<parallel>, #tpu.dimension_semantics<arbitrary>], iteration_bounds = array<i64: 1, 1>, scalar_prefetch = 0 : i64, scratch_operands = 4 : i64, tpu.core_type = #tpu.core_type<tc>, window_params = [{transform_indices = @transform_0, window_bounds = array<i64: 8, 16, 128>}, {pipeline_mode = #tpu.pipeline_mode<synchronous>, transform_indices = @transform_1, window_bounds = array<i64: 32, 128>}, {pipeline_mode = #tpu.pipeline_mode<synchronous>, transform_indices = @transform_2, window_bounds = array<i64: 32, 128>}, {pipeline_mode = #tpu.pipeline_mode<synchronous>, transform_indices = @transform_3, window_bounds = array<i64: 32, 128>}, {pipeline_mode = #tpu.pipeline_mode<synchronous>, transform_indices = @transform_4, window_bounds = array<i64: 1, 128>}, {pipeline_mode = #tpu.pipeline_mode<synchronous>, transform_indices = @transform_5, window_bounds = array<i64: 64, 128>}, {pipeline_mode = #tpu.pipeline_mode<synchronous>, transform_indices = @transform_6, window_bounds = array<i64: 1, 128>}, {transform_indices = @transform_7, window_bounds = array<i64: 16, 128>}]} {
    %c0_i32 = arith.constant 0 : i32
    %0 = arith.cmpi eq, %arg1, %c0_i32 : i32
    %1 = arith.extui %0 : i1 to i32
    %c0_i32_0 = arith.constant 0 : i32
    %2 = arith.cmpi ne, %1, %c0_i32_0 : i32
    scf.if %2 {
      %cst_82 = arith.constant 0.000000e+00 : f32
      %386 = vector.broadcast %cst_82 : f32 to vector<16x32xf32>
      %c0_83 = arith.constant 0 : index
      %c0_84 = arith.constant 0 : index
      %387 = vector.load %arg10[%c0_83, %c0_84] : memref<16x32xf32, #tpu.memory_space<vmem>>, vector<16x32xf32>
      tpu.vector_store %arg10[%c0_83, %c0_84], %386 {strides = array<i32>} : memref<16x32xf32, #tpu.memory_space<vmem>>, vector<16x32xf32>,
      %cst_85 = arith.constant 0.000000e+00 : f32
      %388 = vector.broadcast %cst_85 : f32 to vector<16x32xf32>
      %c0_86 = arith.constant 0 : index
      %c0_87 = arith.constant 0 : index
      %389 = vector.load %arg11[%c0_86, %c0_87] : memref<16x32xf32, #tpu.memory_space<vmem>>, vector<16x32xf32>
      tpu.vector_store %arg11[%c0_86, %c0_87], %388 {strides = array<i32>} : memref<16x32xf32, #tpu.memory_space<vmem>>, vector<16x32xf32>,
      %cst_88 = arith.constant 0.000000e+00 : f32
      %390 = vector.broadcast %cst_88 : f32 to vector<16x32xf32>
      %c0_89 = arith.constant 0 : index
      %c0_90 = arith.constant 0 : index
      %391 = vector.load %arg12[%c0_89, %c0_90] : memref<16x32xf32, #tpu.memory_space<vmem>>, vector<16x32xf32>
      tpu.vector_store %arg12[%c0_89, %c0_90], %390 {strides = array<i32>} : memref<16x32xf32, #tpu.memory_space<vmem>>, vector<16x32xf32>,
      %cst_91 = arith.constant 0.000000e+00 : f32
      %392 = vector.broadcast %cst_91 : f32 to vector<16x32xf32>
      %c0_92 = arith.constant 0 : index
      %c0_93 = arith.constant 0 : index
      %393 = vector.load %arg13[%c0_92, %c0_93] : memref<16x32xf32, #tpu.memory_space<vmem>>, vector<16x32xf32>
      tpu.vector_store %arg13[%c0_92, %c0_93], %392 {strides = array<i32>} : memref<16x32xf32, #tpu.memory_space<vmem>>, vector<16x32xf32>,
    } else {
    }
    %c0 = arith.constant 0 : index
    %c0_1 = arith.constant 0 : index
    %3 = vector.load %arg3[%c0, %c0_1] : memref<32x128xbf16, #tpu.memory_space<vmem>>, vector<32x128xbf16>
    %c0_2 = arith.constant 0 : index
    %c0_3 = arith.constant 0 : index
    %4 = vector.load %arg4[%c0_2, %c0_3] : memref<32x128xbf16, #tpu.memory_space<vmem>>, vector<32x128xbf16>
    %c0_4 = arith.constant 0 : index
    %c0_5 = arith.constant 0 : index
    %5 = vector.load %arg5[%c0_4, %c0_5] : memref<32x128xbf16, #tpu.memory_space<vmem>>, vector<32x128xbf16>
    %c0_6 = arith.constant 0 : index
    %c0_7 = arith.constant 0 : index
    %6 = vector.load %arg6[%c0_6, %c0_7] : memref<1x128xf32, #tpu.memory_space<vmem>>, vector<1x128xf32>
    %c0_8 = arith.constant 0 : index
    %c0_9 = arith.constant 0 : index
    %7 = vector.load %arg10[%c0_8, %c0_9] : memref<16x32xf32, #tpu.memory_space<vmem>>, vector<16x32xf32>
    %c0_10 = arith.constant 0 : index
    %c0_11 = arith.constant 0 : index
    %8 = vector.load %arg11[%c0_10, %c0_11] : memref<16x32xf32, #tpu.memory_space<vmem>>, vector<16x32xf32>
    %c0_12 = arith.constant 0 : index
    %c0_13 = arith.constant 0 : index
    %9 = vector.load %arg12[%c0_12, %c0_13] : memref<16x32xf32, #tpu.memory_space<vmem>>, vector<16x32xf32>
    %c0_14 = arith.constant 0 : index
    %c0_15 = arith.constant 0 : index
    %10 = vector.load %arg13[%c0_14, %c0_15] : memref<16x32xf32, #tpu.memory_space<vmem>>, vector<16x32xf32>
    %c0_i32_16 = arith.constant 0 : i32
    %11 = arith.index_cast %c0_i32_16 : i32 to index
    %c0_17 = arith.constant 0 : index
    %c0_18 = arith.constant 0 : index
    %12 = vector.load %arg2[%11, %c0_17, %c0_18] : memref<8x16x128xbf16, #tpu.memory_space<vmem>>, vector<1x16x128xbf16>
    %13 = vector.shape_cast %12 : vector<1x16x128xbf16> to vector<16x128xbf16>
    %14 = arith.extf %13 : vector<16x128xbf16> to vector<16x128xf32>
    %15 = arith.truncf %7 : vector<16x32xf32> to vector<16x32xbf16>
    %cst = arith.constant dense<0.000000e+00> : vector<16x128xf32>
    %16 = tpu.matmul %15, %3, %cst {dimension_numbers = #tpu.dot_dimension_numbers<[1], [0], [0], [1], [0, 0, 1, 1], [], []>} : vector<16x32xbf16>, vector<32x128xbf16>, vector<16x128xf32> -> vector<16x128xf32>
    %17 = arith.addf %14, %16 : vector<16x128xf32>
    %18 = vector.extract_strided_slice %17 {offsets = [0, 0], sizes = [16, 96], strides = [1, 1]} : vector<16x128xf32> to vector<16x96xf32>
    %19 = arith.negf %18 : vector<16x96xf32>
    %20 = math.exp %19 : vector<16x96xf32>
    %cst_19 = arith.constant 1.000000e+00 : f32
    %21 = vector.broadcast %cst_19 : f32 to vector<16x96xf32>
    %22 = arith.addf %21, %20 : vector<16x96xf32>
    %23 = arith.divf %21, %22 : vector<16x96xf32>
    %24 = vector.extract_strided_slice %23 {offsets = [0, 0], sizes = [16, 32], strides = [1, 1]} : vector<16x96xf32> to vector<16x32xf32>
    %25 = vector.extract_strided_slice %23 {offsets = [0, 32], sizes = [16, 32], strides = [1, 1]} : vector<16x96xf32> to vector<16x32xf32>
    %26 = vector.extract_strided_slice %23 {offsets = [0, 64], sizes = [16, 32], strides = [1, 1]} : vector<16x96xf32> to vector<16x32xf32>
    %27 = vector.extract_strided_slice %17 {offsets = [0, 96], sizes = [16, 32], strides = [1, 1]} : vector<16x128xf32> to vector<16x32xf32>
    %28 = math.tanh %27 : vector<16x32xf32>
    %29 = arith.mulf %25, %8 : vector<16x32xf32>
    %30 = arith.mulf %24, %28 : vector<16x32xf32>
    %31 = arith.addf %29, %30 : vector<16x32xf32>
    %32 = math.tanh %31 : vector<16x32xf32>
    %33 = arith.mulf %26, %32 : vector<16x32xf32>
    %34 = arith.truncf %33 : vector<16x32xf32> to vector<16x32xbf16>
    %cst_20 = arith.constant dense<0.000000e+00> : vector<16x128xf32>
    %35 = tpu.matmul %34, %4, %cst_20 {dimension_numbers = #tpu.dot_dimension_numbers<[1], [0], [0], [1], [0, 0, 1, 1], [], []>} : vector<16x32xbf16>, vector<32x128xbf16>, vector<16x128xf32> -> vector<16x128xf32>
    %36 = arith.truncf %9 : vector<16x32xf32> to vector<16x32xbf16>
    %cst_21 = arith.constant dense<0.000000e+00> : vector<16x128xf32>
    %37 = tpu.matmul %36, %5, %cst_21 {dimension_numbers = #tpu.dot_dimension_numbers<[1], [0], [0], [1], [0, 0, 1, 1], [], []>} : vector<16x32xbf16>, vector<32x128xbf16>, vector<16x128xf32> -> vector<16x128xf32>
    %38 = arith.addf %35, %37 : vector<16x128xf32>
    %39 = vector.broadcast %6 : vector<1x128xf32> to vector<16x128xf32>
    %40 = arith.addf %38, %39 : vector<16x128xf32>
    %41 = vector.extract_strided_slice %40 {offsets = [0, 0], sizes = [16, 96], strides = [1, 1]} : vector<16x128xf32> to vector<16x96xf32>
    %42 = arith.negf %41 : vector<16x96xf32>
    %43 = math.exp %42 : vector<16x96xf32>
    %cst_22 = arith.constant 1.000000e+00 : f32
    %44 = vector.broadcast %cst_22 : f32 to vector<16x96xf32>
    %45 = arith.addf %44, %43 : vector<16x96xf32>
    %46 = arith.divf %44, %45 : vector<16x96xf32>
    %47 = vector.extract_strided_slice %46 {offsets = [0, 0], sizes = [16, 32], strides = [1, 1]} : vector<16x96xf32> to vector<16x32xf32>
    %48 = vector.extract_strided_slice %46 {offsets = [0, 32], sizes = [16, 32], strides = [1, 1]} : vector<16x96xf32> to vector<16x32xf32>
    %49 = vector.extract_strided_slice %46 {offsets = [0, 64], sizes = [16, 32], strides = [1, 1]} : vector<16x96xf32> to vector<16x32xf32>
    %50 = vector.extract_strided_slice %40 {offsets = [0, 96], sizes = [16, 32], strides = [1, 1]} : vector<16x128xf32> to vector<16x32xf32>
    %51 = math.tanh %50 : vector<16x32xf32>
    %52 = arith.mulf %48, %10 : vector<16x32xf32>
    %53 = arith.mulf %47, %51 : vector<16x32xf32>
    %54 = arith.addf %52, %53 : vector<16x32xf32>
    %55 = math.tanh %54 : vector<16x32xf32>
    %56 = arith.mulf %49, %55 : vector<16x32xf32>
    %c1_i32 = arith.constant 1 : i32
    %57 = arith.index_cast %c1_i32 : i32 to index
    %c0_23 = arith.constant 0 : index
    %c0_24 = arith.constant 0 : index
    %58 = vector.load %arg2[%57, %c0_23, %c0_24] : memref<8x16x128xbf16, #tpu.memory_space<vmem>>, vector<1x16x128xbf16>
    %59 = vector.shape_cast %58 : vector<1x16x128xbf16> to vector<16x128xbf16>
    %60 = arith.extf %59 : vector<16x128xbf16> to vector<16x128xf32>
    %61 = arith.truncf %33 : vector<16x32xf32> to vector<16x32xbf16>
    %cst_25 = arith.constant dense<0.000000e+00> : vector<16x128xf32>
    %62 = tpu.matmul %61, %3, %cst_25 {dimension_numbers = #tpu.dot_dimension_numbers<[1], [0], [0], [1], [0, 0, 1, 1], [], []>} : vector<16x32xbf16>, vector<32x128xbf16>, vector<16x128xf32> -> vector<16x128xf32>
    %63 = arith.addf %60, %62 : vector<16x128xf32>
    %64 = vector.extract_strided_slice %63 {offsets = [0, 0], sizes = [16, 96], strides = [1, 1]} : vector<16x128xf32> to vector<16x96xf32>
    %65 = arith.negf %64 : vector<16x96xf32>
    %66 = math.exp %65 : vector<16x96xf32>
    %cst_26 = arith.constant 1.000000e+00 : f32
    %67 = vector.broadcast %cst_26 : f32 to vector<16x96xf32>
    %68 = arith.addf %67, %66 : vector<16x96xf32>
    %69 = arith.divf %67, %68 : vector<16x96xf32>
    %70 = vector.extract_strided_slice %69 {offsets = [0, 0], sizes = [16, 32], strides = [1, 1]} : vector<16x96xf32> to vector<16x32xf32>
    %71 = vector.extract_strided_slice %69 {offsets = [0, 32], sizes = [16, 32], strides = [1, 1]} : vector<16x96xf32> to vector<16x32xf32>
    %72 = vector.extract_strided_slice %69 {offsets = [0, 64], sizes = [16, 32], strides = [1, 1]} : vector<16x96xf32> to vector<16x32xf32>
    %73 = vector.extract_strided_slice %63 {offsets = [0, 96], sizes = [16, 32], strides = [1, 1]} : vector<16x128xf32> to vector<16x32xf32>
    %74 = math.tanh %73 : vector<16x32xf32>
    %75 = arith.mulf %71, %31 : vector<16x32xf32>
    %76 = arith.mulf %70, %74 : vector<16x32xf32>
    %77 = arith.addf %75, %76 : vector<16x32xf32>
    %78 = math.tanh %77 : vector<16x32xf32>
    %79 = arith.mulf %72, %78 : vector<16x32xf32>
    %80 = arith.truncf %79 : vector<16x32xf32> to vector<16x32xbf16>
    %cst_27 = arith.constant dense<0.000000e+00> : vector<16x128xf32>
    %81 = tpu.matmul %80, %4, %cst_27 {dimension_numbers = #tpu.dot_dimension_numbers<[1], [0], [0], [1], [0, 0, 1, 1], [], []>} : vector<16x32xbf16>, vector<32x128xbf16>, vector<16x128xf32> -> vector<16x128xf32>
    %82 = arith.truncf %56 : vector<16x32xf32> to vector<16x32xbf16>
    %cst_28 = arith.constant dense<0.000000e+00> : vector<16x128xf32>
    %83 = tpu.matmul %82, %5, %cst_28 {dimension_numbers = #tpu.dot_dimension_numbers<[1], [0], [0], [1], [0, 0, 1, 1], [], []>} : vector<16x32xbf16>, vector<32x128xbf16>, vector<16x128xf32> -> vector<16x128xf32>
    %84 = arith.addf %81, %83 : vector<16x128xf32>
    %85 = vector.broadcast %6 : vector<1x128xf32> to vector<16x128xf32>
    %86 = arith.addf %84, %85 : vector<16x128xf32>
    %87 = vector.extract_strided_slice %86 {offsets = [0, 0], sizes = [16, 96], strides = [1, 1]} : vector<16x128xf32> to vector<16x96xf32>
    %88 = arith.negf %87 : vector<16x96xf32>
    %89 = math.exp %88 : vector<16x96xf32>
    %cst_29 = arith.constant 1.000000e+00 : f32
    %90 = vector.broadcast %cst_29 : f32 to vector<16x96xf32>
    %91 = arith.addf %90, %89 : vector<16x96xf32>
    %92 = arith.divf %90, %91 : vector<16x96xf32>
    %93 = vector.extract_strided_slice %92 {offsets = [0, 0], sizes = [16, 32], strides = [1, 1]} : vector<16x96xf32> to vector<16x32xf32>
    %94 = vector.extract_strided_slice %92 {offsets = [0, 32], sizes = [16, 32], strides = [1, 1]} : vector<16x96xf32> to vector<16x32xf32>
    %95 = vector.extract_strided_slice %92 {offsets = [0, 64], sizes = [16, 32], strides = [1, 1]} : vector<16x96xf32> to vector<16x32xf32>
    %96 = vector.extract_strided_slice %86 {offsets = [0, 96], sizes = [16, 32], strides = [1, 1]} : vector<16x128xf32> to vector<16x32xf32>
    %97 = math.tanh %96 : vector<16x32xf32>
    %98 = arith.mulf %94, %54 : vector<16x32xf32>
    %99 = arith.mulf %93, %97 : vector<16x32xf32>
    %100 = arith.addf %98, %99 : vector<16x32xf32>
    %101 = math.tanh %100 : vector<16x32xf32>
    %102 = arith.mulf %95, %101 : vector<16x32xf32>
    %c2_i32 = arith.constant 2 : i32
    %103 = arith.index_cast %c2_i32 : i32 to index
    %c0_30 = arith.constant 0 : index
    %c0_31 = arith.constant 0 : index
    %104 = vector.load %arg2[%103, %c0_30, %c0_31] : memref<8x16x128xbf16, #tpu.memory_space<vmem>>, vector<1x16x128xbf16>
    %105 = vector.shape_cast %104 : vector<1x16x128xbf16> to vector<16x128xbf16>
    %106 = arith.extf %105 : vector<16x128xbf16> to vector<16x128xf32>
    %107 = arith.truncf %79 : vector<16x32xf32> to vector<16x32xbf16>
    %cst_32 = arith.constant dense<0.000000e+00> : vector<16x128xf32>
    %108 = tpu.matmul %107, %3, %cst_32 {dimension_numbers = #tpu.dot_dimension_numbers<[1], [0], [0], [1], [0, 0, 1, 1], [], []>} : vector<16x32xbf16>, vector<32x128xbf16>, vector<16x128xf32> -> vector<16x128xf32>
    %109 = arith.addf %106, %108 : vector<16x128xf32>
    %110 = vector.extract_strided_slice %109 {offsets = [0, 0], sizes = [16, 96], strides = [1, 1]} : vector<16x128xf32> to vector<16x96xf32>
    %111 = arith.negf %110 : vector<16x96xf32>
    %112 = math.exp %111 : vector<16x96xf32>
    %cst_33 = arith.constant 1.000000e+00 : f32
    %113 = vector.broadcast %cst_33 : f32 to vector<16x96xf32>
    %114 = arith.addf %113, %112 : vector<16x96xf32>
    %115 = arith.divf %113, %114 : vector<16x96xf32>
    %116 = vector.extract_strided_slice %115 {offsets = [0, 0], sizes = [16, 32], strides = [1, 1]} : vector<16x96xf32> to vector<16x32xf32>
    %117 = vector.extract_strided_slice %115 {offsets = [0, 32], sizes = [16, 32], strides = [1, 1]} : vector<16x96xf32> to vector<16x32xf32>
    %118 = vector.extract_strided_slice %115 {offsets = [0, 64], sizes = [16, 32], strides = [1, 1]} : vector<16x96xf32> to vector<16x32xf32>
    %119 = vector.extract_strided_slice %109 {offsets = [0, 96], sizes = [16, 32], strides = [1, 1]} : vector<16x128xf32> to vector<16x32xf32>
    %120 = math.tanh %119 : vector<16x32xf32>
    %121 = arith.mulf %117, %77 : vector<16x32xf32>
    %122 = arith.mulf %116, %120 : vector<16x32xf32>
    %123 = arith.addf %121, %122 : vector<16x32xf32>
    %124 = math.tanh %123 : vector<16x32xf32>
    %125 = arith.mulf %118, %124 : vector<16x32xf32>
    %126 = arith.truncf %125 : vector<16x32xf32> to vector<16x32xbf16>
    %cst_34 = arith.constant dense<0.000000e+00> : vector<16x128xf32>
    %127 = tpu.matmul %126, %4, %cst_34 {dimension_numbers = #tpu.dot_dimension_numbers<[1], [0], [0], [1], [0, 0, 1, 1], [], []>} : vector<16x32xbf16>, vector<32x128xbf16>, vector<16x128xf32> -> vector<16x128xf32>
    %128 = arith.truncf %102 : vector<16x32xf32> to vector<16x32xbf16>
    %cst_35 = arith.constant dense<0.000000e+00> : vector<16x128xf32>
    %129 = tpu.matmul %128, %5, %cst_35 {dimension_numbers = #tpu.dot_dimension_numbers<[1], [0], [0], [1], [0, 0, 1, 1], [], []>} : vector<16x32xbf16>, vector<32x128xbf16>, vector<16x128xf32> -> vector<16x128xf32>
    %130 = arith.addf %127, %129 : vector<16x128xf32>
    %131 = vector.broadcast %6 : vector<1x128xf32> to vector<16x128xf32>
    %132 = arith.addf %130, %131 : vector<16x128xf32>
    %133 = vector.extract_strided_slice %132 {offsets = [0, 0], sizes = [16, 96], strides = [1, 1]} : vector<16x128xf32> to vector<16x96xf32>
    %134 = arith.negf %133 : vector<16x96xf32>
    %135 = math.exp %134 : vector<16x96xf32>
    %cst_36 = arith.constant 1.000000e+00 : f32
    %136 = vector.broadcast %cst_36 : f32 to vector<16x96xf32>
    %137 = arith.addf %136, %135 : vector<16x96xf32>
    %138 = arith.divf %136, %137 : vector<16x96xf32>
    %139 = vector.extract_strided_slice %138 {offsets = [0, 0], sizes = [16, 32], strides = [1, 1]} : vector<16x96xf32> to vector<16x32xf32>
    %140 = vector.extract_strided_slice %138 {offsets = [0, 32], sizes = [16, 32], strides = [1, 1]} : vector<16x96xf32> to vector<16x32xf32>
    %141 = vector.extract_strided_slice %138 {offsets = [0, 64], sizes = [16, 32], strides = [1, 1]} : vector<16x96xf32> to vector<16x32xf32>
    %142 = vector.extract_strided_slice %132 {offsets = [0, 96], sizes = [16, 32], strides = [1, 1]} : vector<16x128xf32> to vector<16x32xf32>
    %143 = math.tanh %142 : vector<16x32xf32>
    %144 = arith.mulf %140, %100 : vector<16x32xf32>
    %145 = arith.mulf %139, %143 : vector<16x32xf32>
    %146 = arith.addf %144, %145 : vector<16x32xf32>
    %147 = math.tanh %146 : vector<16x32xf32>
    %148 = arith.mulf %141, %147 : vector<16x32xf32>
    %c3_i32 = arith.constant 3 : i32
    %149 = arith.index_cast %c3_i32 : i32 to index
    %c0_37 = arith.constant 0 : index
    %c0_38 = arith.constant 0 : index
    %150 = vector.load %arg2[%149, %c0_37, %c0_38] : memref<8x16x128xbf16, #tpu.memory_space<vmem>>, vector<1x16x128xbf16>
    %151 = vector.shape_cast %150 : vector<1x16x128xbf16> to vector<16x128xbf16>
    %152 = arith.extf %151 : vector<16x128xbf16> to vector<16x128xf32>
    %153 = arith.truncf %125 : vector<16x32xf32> to vector<16x32xbf16>
    %cst_39 = arith.constant dense<0.000000e+00> : vector<16x128xf32>
    %154 = tpu.matmul %153, %3, %cst_39 {dimension_numbers = #tpu.dot_dimension_numbers<[1], [0], [0], [1], [0, 0, 1, 1], [], []>} : vector<16x32xbf16>, vector<32x128xbf16>, vector<16x128xf32> -> vector<16x128xf32>
    %155 = arith.addf %152, %154 : vector<16x128xf32>
    %156 = vector.extract_strided_slice %155 {offsets = [0, 0], sizes = [16, 96], strides = [1, 1]} : vector<16x128xf32> to vector<16x96xf32>
    %157 = arith.negf %156 : vector<16x96xf32>
    %158 = math.exp %157 : vector<16x96xf32>
    %cst_40 = arith.constant 1.000000e+00 : f32
    %159 = vector.broadcast %cst_40 : f32 to vector<16x96xf32>
    %160 = arith.addf %159, %158 : vector<16x96xf32>
    %161 = arith.divf %159, %160 : vector<16x96xf32>
    %162 = vector.extract_strided_slice %161 {offsets = [0, 0], sizes = [16, 32], strides = [1, 1]} : vector<16x96xf32> to vector<16x32xf32>
    %163 = vector.extract_strided_slice %161 {offsets = [0, 32], sizes = [16, 32], strides = [1, 1]} : vector<16x96xf32> to vector<16x32xf32>
    %164 = vector.extract_strided_slice %161 {offsets = [0, 64], sizes = [16, 32], strides = [1, 1]} : vector<16x96xf32> to vector<16x32xf32>
    %165 = vector.extract_strided_slice %155 {offsets = [0, 96], sizes = [16, 32], strides = [1, 1]} : vector<16x128xf32> to vector<16x32xf32>
    %166 = math.tanh %165 : vector<16x32xf32>
    %167 = arith.mulf %163, %123 : vector<16x32xf32>
    %168 = arith.mulf %162, %166 : vector<16x32xf32>
    %169 = arith.addf %167, %168 : vector<16x32xf32>
    %170 = math.tanh %169 : vector<16x32xf32>
    %171 = arith.mulf %164, %170 : vector<16x32xf32>
    %172 = arith.truncf %171 : vector<16x32xf32> to vector<16x32xbf16>
    %cst_41 = arith.constant dense<0.000000e+00> : vector<16x128xf32>
    %173 = tpu.matmul %172, %4, %cst_41 {dimension_numbers = #tpu.dot_dimension_numbers<[1], [0], [0], [1], [0, 0, 1, 1], [], []>} : vector<16x32xbf16>, vector<32x128xbf16>, vector<16x128xf32> -> vector<16x128xf32>
    %174 = arith.truncf %148 : vector<16x32xf32> to vector<16x32xbf16>
    %cst_42 = arith.constant dense<0.000000e+00> : vector<16x128xf32>
    %175 = tpu.matmul %174, %5, %cst_42 {dimension_numbers = #tpu.dot_dimension_numbers<[1], [0], [0], [1], [0, 0, 1, 1], [], []>} : vector<16x32xbf16>, vector<32x128xbf16>, vector<16x128xf32> -> vector<16x128xf32>
    %176 = arith.addf %173, %175 : vector<16x128xf32>
    %177 = vector.broadcast %6 : vector<1x128xf32> to vector<16x128xf32>
    %178 = arith.addf %176, %177 : vector<16x128xf32>
    %179 = vector.extract_strided_slice %178 {offsets = [0, 0], sizes = [16, 96], strides = [1, 1]} : vector<16x128xf32> to vector<16x96xf32>
    %180 = arith.negf %179 : vector<16x96xf32>
    %181 = math.exp %180 : vector<16x96xf32>
    %cst_43 = arith.constant 1.000000e+00 : f32
    %182 = vector.broadcast %cst_43 : f32 to vector<16x96xf32>
    %183 = arith.addf %182, %181 : vector<16x96xf32>
    %184 = arith.divf %182, %183 : vector<16x96xf32>
    %185 = vector.extract_strided_slice %184 {offsets = [0, 0], sizes = [16, 32], strides = [1, 1]} : vector<16x96xf32> to vector<16x32xf32>
    %186 = vector.extract_strided_slice %184 {offsets = [0, 32], sizes = [16, 32], strides = [1, 1]} : vector<16x96xf32> to vector<16x32xf32>
    %187 = vector.extract_strided_slice %184 {offsets = [0, 64], sizes = [16, 32], strides = [1, 1]} : vector<16x96xf32> to vector<16x32xf32>
    %188 = vector.extract_strided_slice %178 {offsets = [0, 96], sizes = [16, 32], strides = [1, 1]} : vector<16x128xf32> to vector<16x32xf32>
    %189 = math.tanh %188 : vector<16x32xf32>
    %190 = arith.mulf %186, %146 : vector<16x32xf32>
    %191 = arith.mulf %185, %189 : vector<16x32xf32>
    %192 = arith.addf %190, %191 : vector<16x32xf32>
    %193 = math.tanh %192 : vector<16x32xf32>
    %194 = arith.mulf %187, %193 : vector<16x32xf32>
    %c4_i32 = arith.constant 4 : i32
    %195 = arith.index_cast %c4_i32 : i32 to index
    %c0_44 = arith.constant 0 : index
    %c0_45 = arith.constant 0 : index
    %196 = vector.load %arg2[%195, %c0_44, %c0_45] : memref<8x16x128xbf16, #tpu.memory_space<vmem>>, vector<1x16x128xbf16>
    %197 = vector.shape_cast %196 : vector<1x16x128xbf16> to vector<16x128xbf16>
    %198 = arith.extf %197 : vector<16x128xbf16> to vector<16x128xf32>
    %199 = arith.truncf %171 : vector<16x32xf32> to vector<16x32xbf16>
    %cst_46 = arith.constant dense<0.000000e+00> : vector<16x128xf32>
    %200 = tpu.matmul %199, %3, %cst_46 {dimension_numbers = #tpu.dot_dimension_numbers<[1], [0], [0], [1], [0, 0, 1, 1], [], []>} : vector<16x32xbf16>, vector<32x128xbf16>, vector<16x128xf32> -> vector<16x128xf32>
    %201 = arith.addf %198, %200 : vector<16x128xf32>
    %202 = vector.extract_strided_slice %201 {offsets = [0, 0], sizes = [16, 96], strides = [1, 1]} : vector<16x128xf32> to vector<16x96xf32>
    %203 = arith.negf %202 : vector<16x96xf32>
    %204 = math.exp %203 : vector<16x96xf32>
    %cst_47 = arith.constant 1.000000e+00 : f32
    %205 = vector.broadcast %cst_47 : f32 to vector<16x96xf32>
    %206 = arith.addf %205, %204 : vector<16x96xf32>
    %207 = arith.divf %205, %206 : vector<16x96xf32>
    %208 = vector.extract_strided_slice %207 {offsets = [0, 0], sizes = [16, 32], strides = [1, 1]} : vector<16x96xf32> to vector<16x32xf32>
    %209 = vector.extract_strided_slice %207 {offsets = [0, 32], sizes = [16, 32], strides = [1, 1]} : vector<16x96xf32> to vector<16x32xf32>
    %210 = vector.extract_strided_slice %207 {offsets = [0, 64], sizes = [16, 32], strides = [1, 1]} : vector<16x96xf32> to vector<16x32xf32>
    %211 = vector.extract_strided_slice %201 {offsets = [0, 96], sizes = [16, 32], strides = [1, 1]} : vector<16x128xf32> to vector<16x32xf32>
    %212 = math.tanh %211 : vector<16x32xf32>
    %213 = arith.mulf %209, %169 : vector<16x32xf32>
    %214 = arith.mulf %208, %212 : vector<16x32xf32>
    %215 = arith.addf %213, %214 : vector<16x32xf32>
    %216 = math.tanh %215 : vector<16x32xf32>
    %217 = arith.mulf %210, %216 : vector<16x32xf32>
    %218 = arith.truncf %217 : vector<16x32xf32> to vector<16x32xbf16>
    %cst_48 = arith.constant dense<0.000000e+00> : vector<16x128xf32>
    %219 = tpu.matmul %218, %4, %cst_48 {dimension_numbers = #tpu.dot_dimension_numbers<[1], [0], [0], [1], [0, 0, 1, 1], [], []>} : vector<16x32xbf16>, vector<32x128xbf16>, vector<16x128xf32> -> vector<16x128xf32>
    %220 = arith.truncf %194 : vector<16x32xf32> to vector<16x32xbf16>
    %cst_49 = arith.constant dense<0.000000e+00> : vector<16x128xf32>
    %221 = tpu.matmul %220, %5, %cst_49 {dimension_numbers = #tpu.dot_dimension_numbers<[1], [0], [0], [1], [0, 0, 1, 1], [], []>} : vector<16x32xbf16>, vector<32x128xbf16>, vector<16x128xf32> -> vector<16x128xf32>
    %222 = arith.addf %219, %221 : vector<16x128xf32>
    %223 = vector.broadcast %6 : vector<1x128xf32> to vector<16x128xf32>
    %224 = arith.addf %222, %223 : vector<16x128xf32>
    %225 = vector.extract_strided_slice %224 {offsets = [0, 0], sizes = [16, 96], strides = [1, 1]} : vector<16x128xf32> to vector<16x96xf32>
    %226 = arith.negf %225 : vector<16x96xf32>
    %227 = math.exp %226 : vector<16x96xf32>
    %cst_50 = arith.constant 1.000000e+00 : f32
    %228 = vector.broadcast %cst_50 : f32 to vector<16x96xf32>
    %229 = arith.addf %228, %227 : vector<16x96xf32>
    %230 = arith.divf %228, %229 : vector<16x96xf32>
    %231 = vector.extract_strided_slice %230 {offsets = [0, 0], sizes = [16, 32], strides = [1, 1]} : vector<16x96xf32> to vector<16x32xf32>
    %232 = vector.extract_strided_slice %230 {offsets = [0, 32], sizes = [16, 32], strides = [1, 1]} : vector<16x96xf32> to vector<16x32xf32>
    %233 = vector.extract_strided_slice %230 {offsets = [0, 64], sizes = [16, 32], strides = [1, 1]} : vector<16x96xf32> to vector<16x32xf32>
    %234 = vector.extract_strided_slice %224 {offsets = [0, 96], sizes = [16, 32], strides = [1, 1]} : vector<16x128xf32> to vector<16x32xf32>
    %235 = math.tanh %234 : vector<16x32xf32>
    %236 = arith.mulf %232, %192 : vector<16x32xf32>
    %237 = arith.mulf %231, %235 : vector<16x32xf32>
    %238 = arith.addf %236, %237 : vector<16x32xf32>
    %239 = math.tanh %238 : vector<16x32xf32>
    %240 = arith.mulf %233, %239 : vector<16x32xf32>
    %c5_i32 = arith.constant 5 : i32
    %241 = arith.index_cast %c5_i32 : i32 to index
    %c0_51 = arith.constant 0 : index
    %c0_52 = arith.constant 0 : index
    %242 = vector.load %arg2[%241, %c0_51, %c0_52] : memref<8x16x128xbf16, #tpu.memory_space<vmem>>, vector<1x16x128xbf16>
    %243 = vector.shape_cast %242 : vector<1x16x128xbf16> to vector<16x128xbf16>
    %244 = arith.extf %243 : vector<16x128xbf16> to vector<16x128xf32>
    %245 = arith.truncf %217 : vector<16x32xf32> to vector<16x32xbf16>
    %cst_53 = arith.constant dense<0.000000e+00> : vector<16x128xf32>
    %246 = tpu.matmul %245, %3, %cst_53 {dimension_numbers = #tpu.dot_dimension_numbers<[1], [0], [0], [1], [0, 0, 1, 1], [], []>} : vector<16x32xbf16>, vector<32x128xbf16>, vector<16x128xf32> -> vector<16x128xf32>
    %247 = arith.addf %244, %246 : vector<16x128xf32>
    %248 = vector.extract_strided_slice %247 {offsets = [0, 0], sizes = [16, 96], strides = [1, 1]} : vector<16x128xf32> to vector<16x96xf32>
    %249 = arith.negf %248 : vector<16x96xf32>
    %250 = math.exp %249 : vector<16x96xf32>
    %cst_54 = arith.constant 1.000000e+00 : f32
    %251 = vector.broadcast %cst_54 : f32 to vector<16x96xf32>
    %252 = arith.addf %251, %250 : vector<16x96xf32>
    %253 = arith.divf %251, %252 : vector<16x96xf32>
    %254 = vector.extract_strided_slice %253 {offsets = [0, 0], sizes = [16, 32], strides = [1, 1]} : vector<16x96xf32> to vector<16x32xf32>
    %255 = vector.extract_strided_slice %253 {offsets = [0, 32], sizes = [16, 32], strides = [1, 1]} : vector<16x96xf32> to vector<16x32xf32>
    %256 = vector.extract_strided_slice %253 {offsets = [0, 64], sizes = [16, 32], strides = [1, 1]} : vector<16x96xf32> to vector<16x32xf32>
    %257 = vector.extract_strided_slice %247 {offsets = [0, 96], sizes = [16, 32], strides = [1, 1]} : vector<16x128xf32> to vector<16x32xf32>
    %258 = math.tanh %257 : vector<16x32xf32>
    %259 = arith.mulf %255, %215 : vector<16x32xf32>
    %260 = arith.mulf %254, %258 : vector<16x32xf32>
    %261 = arith.addf %259, %260 : vector<16x32xf32>
    %262 = math.tanh %261 : vector<16x32xf32>
    %263 = arith.mulf %256, %262 : vector<16x32xf32>
    %264 = arith.truncf %263 : vector<16x32xf32> to vector<16x32xbf16>
    %cst_55 = arith.constant dense<0.000000e+00> : vector<16x128xf32>
    %265 = tpu.matmul %264, %4, %cst_55 {dimension_numbers = #tpu.dot_dimension_numbers<[1], [0], [0], [1], [0, 0, 1, 1], [], []>} : vector<16x32xbf16>, vector<32x128xbf16>, vector<16x128xf32> -> vector<16x128xf32>
    %266 = arith.truncf %240 : vector<16x32xf32> to vector<16x32xbf16>
    %cst_56 = arith.constant dense<0.000000e+00> : vector<16x128xf32>
    %267 = tpu.matmul %266, %5, %cst_56 {dimension_numbers = #tpu.dot_dimension_numbers<[1], [0], [0], [1], [0, 0, 1, 1], [], []>} : vector<16x32xbf16>, vector<32x128xbf16>, vector<16x128xf32> -> vector<16x128xf32>
    %268 = arith.addf %265, %267 : vector<16x128xf32>
    %269 = vector.broadcast %6 : vector<1x128xf32> to vector<16x128xf32>
    %270 = arith.addf %268, %269 : vector<16x128xf32>
    %271 = vector.extract_strided_slice %270 {offsets = [0, 0], sizes = [16, 96], strides = [1, 1]} : vector<16x128xf32> to vector<16x96xf32>
    %272 = arith.negf %271 : vector<16x96xf32>
    %273 = math.exp %272 : vector<16x96xf32>
    %cst_57 = arith.constant 1.000000e+00 : f32
    %274 = vector.broadcast %cst_57 : f32 to vector<16x96xf32>
    %275 = arith.addf %274, %273 : vector<16x96xf32>
    %276 = arith.divf %274, %275 : vector<16x96xf32>
    %277 = vector.extract_strided_slice %276 {offsets = [0, 0], sizes = [16, 32], strides = [1, 1]} : vector<16x96xf32> to vector<16x32xf32>
    %278 = vector.extract_strided_slice %276 {offsets = [0, 32], sizes = [16, 32], strides = [1, 1]} : vector<16x96xf32> to vector<16x32xf32>
    %279 = vector.extract_strided_slice %276 {offsets = [0, 64], sizes = [16, 32], strides = [1, 1]} : vector<16x96xf32> to vector<16x32xf32>
    %280 = vector.extract_strided_slice %270 {offsets = [0, 96], sizes = [16, 32], strides = [1, 1]} : vector<16x128xf32> to vector<16x32xf32>
    %281 = math.tanh %280 : vector<16x32xf32>
    %282 = arith.mulf %278, %238 : vector<16x32xf32>
    %283 = arith.mulf %277, %281 : vector<16x32xf32>
    %284 = arith.addf %282, %283 : vector<16x32xf32>
    %285 = math.tanh %284 : vector<16x32xf32>
    %286 = arith.mulf %279, %285 : vector<16x32xf32>
    %c6_i32 = arith.constant 6 : i32
    %287 = arith.index_cast %c6_i32 : i32 to index
    %c0_58 = arith.constant 0 : index
    %c0_59 = arith.constant 0 : index
    %288 = vector.load %arg2[%287, %c0_58, %c0_59] : memref<8x16x128xbf16, #tpu.memory_space<vmem>>, vector<1x16x128xbf16>
    %289 = vector.shape_cast %288 : vector<1x16x128xbf16> to vector<16x128xbf16>
    %290 = arith.extf %289 : vector<16x128xbf16> to vector<16x128xf32>
    %291 = arith.truncf %263 : vector<16x32xf32> to vector<16x32xbf16>
    %cst_60 = arith.constant dense<0.000000e+00> : vector<16x128xf32>
    %292 = tpu.matmul %291, %3, %cst_60 {dimension_numbers = #tpu.dot_dimension_numbers<[1], [0], [0], [1], [0, 0, 1, 1], [], []>} : vector<16x32xbf16>, vector<32x128xbf16>, vector<16x128xf32> -> vector<16x128xf32>
    %293 = arith.addf %290, %292 : vector<16x128xf32>
    %294 = vector.extract_strided_slice %293 {offsets = [0, 0], sizes = [16, 96], strides = [1, 1]} : vector<16x128xf32> to vector<16x96xf32>
    %295 = arith.negf %294 : vector<16x96xf32>
    %296 = math.exp %295 : vector<16x96xf32>
    %cst_61 = arith.constant 1.000000e+00 : f32
    %297 = vector.broadcast %cst_61 : f32 to vector<16x96xf32>
    %298 = arith.addf %297, %296 : vector<16x96xf32>
    %299 = arith.divf %297, %298 : vector<16x96xf32>
    %300 = vector.extract_strided_slice %299 {offsets = [0, 0], sizes = [16, 32], strides = [1, 1]} : vector<16x96xf32> to vector<16x32xf32>
    %301 = vector.extract_strided_slice %299 {offsets = [0, 32], sizes = [16, 32], strides = [1, 1]} : vector<16x96xf32> to vector<16x32xf32>
    %302 = vector.extract_strided_slice %299 {offsets = [0, 64], sizes = [16, 32], strides = [1, 1]} : vector<16x96xf32> to vector<16x32xf32>
    %303 = vector.extract_strided_slice %293 {offsets = [0, 96], sizes = [16, 32], strides = [1, 1]} : vector<16x128xf32> to vector<16x32xf32>
    %304 = math.tanh %303 : vector<16x32xf32>
    %305 = arith.mulf %301, %261 : vector<16x32xf32>
    %306 = arith.mulf %300, %304 : vector<16x32xf32>
    %307 = arith.addf %305, %306 : vector<16x32xf32>
    %308 = math.tanh %307 : vector<16x32xf32>
    %309 = arith.mulf %302, %308 : vector<16x32xf32>
    %310 = arith.truncf %309 : vector<16x32xf32> to vector<16x32xbf16>
    %cst_62 = arith.constant dense<0.000000e+00> : vector<16x128xf32>
    %311 = tpu.matmul %310, %4, %cst_62 {dimension_numbers = #tpu.dot_dimension_numbers<[1], [0], [0], [1], [0, 0, 1, 1], [], []>} : vector<16x32xbf16>, vector<32x128xbf16>, vector<16x128xf32> -> vector<16x128xf32>
    %312 = arith.truncf %286 : vector<16x32xf32> to vector<16x32xbf16>
    %cst_63 = arith.constant dense<0.000000e+00> : vector<16x128xf32>
    %313 = tpu.matmul %312, %5, %cst_63 {dimension_numbers = #tpu.dot_dimension_numbers<[1], [0], [0], [1], [0, 0, 1, 1], [], []>} : vector<16x32xbf16>, vector<32x128xbf16>, vector<16x128xf32> -> vector<16x128xf32>
    %314 = arith.addf %311, %313 : vector<16x128xf32>
    %315 = vector.broadcast %6 : vector<1x128xf32> to vector<16x128xf32>
    %316 = arith.addf %314, %315 : vector<16x128xf32>
    %317 = vector.extract_strided_slice %316 {offsets = [0, 0], sizes = [16, 96], strides = [1, 1]} : vector<16x128xf32> to vector<16x96xf32>
    %318 = arith.negf %317 : vector<16x96xf32>
    %319 = math.exp %318 : vector<16x96xf32>
    %cst_64 = arith.constant 1.000000e+00 : f32
    %320 = vector.broadcast %cst_64 : f32 to vector<16x96xf32>
    %321 = arith.addf %320, %319 : vector<16x96xf32>
    %322 = arith.divf %320, %321 : vector<16x96xf32>
    %323 = vector.extract_strided_slice %322 {offsets = [0, 0], sizes = [16, 32], strides = [1, 1]} : vector<16x96xf32> to vector<16x32xf32>
    %324 = vector.extract_strided_slice %322 {offsets = [0, 32], sizes = [16, 32], strides = [1, 1]} : vector<16x96xf32> to vector<16x32xf32>
    %325 = vector.extract_strided_slice %322 {offsets = [0, 64], sizes = [16, 32], strides = [1, 1]} : vector<16x96xf32> to vector<16x32xf32>
    %326 = vector.extract_strided_slice %316 {offsets = [0, 96], sizes = [16, 32], strides = [1, 1]} : vector<16x128xf32> to vector<16x32xf32>
    %327 = math.tanh %326 : vector<16x32xf32>
    %328 = arith.mulf %324, %284 : vector<16x32xf32>
    %329 = arith.mulf %323, %327 : vector<16x32xf32>
    %330 = arith.addf %328, %329 : vector<16x32xf32>
    %331 = math.tanh %330 : vector<16x32xf32>
    %332 = arith.mulf %325, %331 : vector<16x32xf32>
    %c7_i32 = arith.constant 7 : i32
    %333 = arith.index_cast %c7_i32 : i32 to index
    %c0_65 = arith.constant 0 : index
    %c0_66 = arith.constant 0 : index
    %334 = vector.load %arg2[%333, %c0_65, %c0_66] : memref<8x16x128xbf16, #tpu.memory_space<vmem>>, vector<1x16x128xbf16>
    %335 = vector.shape_cast %334 : vector<1x16x128xbf16> to vector<16x128xbf16>
    %336 = arith.extf %335 : vector<16x128xbf16> to vector<16x128xf32>
    %337 = arith.truncf %309 : vector<16x32xf32> to vector<16x32xbf16>
    %cst_67 = arith.constant dense<0.000000e+00> : vector<16x128xf32>
    %338 = tpu.matmul %337, %3, %cst_67 {dimension_numbers = #tpu.dot_dimension_numbers<[1], [0], [0], [1], [0, 0, 1, 1], [], []>} : vector<16x32xbf16>, vector<32x128xbf16>, vector<16x128xf32> -> vector<16x128xf32>
    %339 = arith.addf %336, %338 : vector<16x128xf32>
    %340 = vector.extract_strided_slice %339 {offsets = [0, 0], sizes = [16, 96], strides = [1, 1]} : vector<16x128xf32> to vector<16x96xf32>
    %341 = arith.negf %340 : vector<16x96xf32>
    %342 = math.exp %341 : vector<16x96xf32>
    %cst_68 = arith.constant 1.000000e+00 : f32
    %343 = vector.broadcast %cst_68 : f32 to vector<16x96xf32>
    %344 = arith.addf %343, %342 : vector<16x96xf32>
    %345 = arith.divf %343, %344 : vector<16x96xf32>
    %346 = vector.extract_strided_slice %345 {offsets = [0, 0], sizes = [16, 32], strides = [1, 1]} : vector<16x96xf32> to vector<16x32xf32>
    %347 = vector.extract_strided_slice %345 {offsets = [0, 32], sizes = [16, 32], strides = [1, 1]} : vector<16x96xf32> to vector<16x32xf32>
    %348 = vector.extract_strided_slice %345 {offsets = [0, 64], sizes = [16, 32], strides = [1, 1]} : vector<16x96xf32> to vector<16x32xf32>
    %349 = vector.extract_strided_slice %339 {offsets = [0, 96], sizes = [16, 32], strides = [1, 1]} : vector<16x128xf32> to vector<16x32xf32>
    %350 = math.tanh %349 : vector<16x32xf32>
    %351 = arith.mulf %347, %307 : vector<16x32xf32>
    %352 = arith.mulf %346, %350 : vector<16x32xf32>
    %353 = arith.addf %351, %352 : vector<16x32xf32>
    %354 = math.tanh %353 : vector<16x32xf32>
    %355 = arith.mulf %348, %354 : vector<16x32xf32>
    %356 = arith.truncf %355 : vector<16x32xf32> to vector<16x32xbf16>
    %cst_69 = arith.constant dense<0.000000e+00> : vector<16x128xf32>
    %357 = tpu.matmul %356, %4, %cst_69 {dimension_numbers = #tpu.dot_dimension_numbers<[1], [0], [0], [1], [0, 0, 1, 1], [], []>} : vector<16x32xbf16>, vector<32x128xbf16>, vector<16x128xf32> -> vector<16x128xf32>
    %358 = arith.truncf %332 : vector<16x32xf32> to vector<16x32xbf16>
    %cst_70 = arith.constant dense<0.000000e+00> : vector<16x128xf32>
    %359 = tpu.matmul %358, %5, %cst_70 {dimension_numbers = #tpu.dot_dimension_numbers<[1], [0], [0], [1], [0, 0, 1, 1], [], []>} : vector<16x32xbf16>, vector<32x128xbf16>, vector<16x128xf32> -> vector<16x128xf32>
    %360 = arith.addf %357, %359 : vector<16x128xf32>
    %361 = vector.broadcast %6 : vector<1x128xf32> to vector<16x128xf32>
    %362 = arith.addf %360, %361 : vector<16x128xf32>
    %363 = vector.extract_strided_slice %362 {offsets = [0, 0], sizes = [16, 96], strides = [1, 1]} : vector<16x128xf32> to vector<16x96xf32>
    %364 = arith.negf %363 : vector<16x96xf32>
    %365 = math.exp %364 : vector<16x96xf32>
    %cst_71 = arith.constant 1.000000e+00 : f32
    %366 = vector.broadcast %cst_71 : f32 to vector<16x96xf32>
    %367 = arith.addf %366, %365 : vector<16x96xf32>
    %368 = arith.divf %366, %367 : vector<16x96xf32>
    %369 = vector.extract_strided_slice %368 {offsets = [0, 0], sizes = [16, 32], strides = [1, 1]} : vector<16x96xf32> to vector<16x32xf32>
    %370 = vector.extract_strided_slice %368 {offsets = [0, 32], sizes = [16, 32], strides = [1, 1]} : vector<16x96xf32> to vector<16x32xf32>
    %371 = vector.extract_strided_slice %368 {offsets = [0, 64], sizes = [16, 32], strides = [1, 1]} : vector<16x96xf32> to vector<16x32xf32>
    %372 = vector.extract_strided_slice %362 {offsets = [0, 96], sizes = [16, 32], strides = [1, 1]} : vector<16x128xf32> to vector<16x32xf32>
    %373 = math.tanh %372 : vector<16x32xf32>
    %374 = arith.mulf %370, %330 : vector<16x32xf32>
    %375 = arith.mulf %369, %373 : vector<16x32xf32>
    %376 = arith.addf %374, %375 : vector<16x32xf32>
    %377 = math.tanh %376 : vector<16x32xf32>
    %378 = arith.mulf %371, %377 : vector<16x32xf32>
    %c8_i32 = arith.constant 8 : i32
    %c0_72 = arith.constant 0 : index
    %c0_73 = arith.constant 0 : index
    %379 = vector.load %arg10[%c0_72, %c0_73] : memref<16x32xf32, #tpu.memory_space<vmem>>, vector<16x32xf32>
    tpu.vector_store %arg10[%c0_72, %c0_73], %355 {strides = array<i32>} : memref<16x32xf32, #tpu.memory_space<vmem>>, vector<16x32xf32>,
    %c0_74 = arith.constant 0 : index
    %c0_75 = arith.constant 0 : index
    %380 = vector.load %arg11[%c0_74, %c0_75] : memref<16x32xf32, #tpu.memory_space<vmem>>, vector<16x32xf32>
    tpu.vector_store %arg11[%c0_74, %c0_75], %353 {strides = array<i32>} : memref<16x32xf32, #tpu.memory_space<vmem>>, vector<16x32xf32>,
    %c0_76 = arith.constant 0 : index
    %c0_77 = arith.constant 0 : index
    %381 = vector.load %arg12[%c0_76, %c0_77] : memref<16x32xf32, #tpu.memory_space<vmem>>, vector<16x32xf32>
    tpu.vector_store %arg12[%c0_76, %c0_77], %378 {strides = array<i32>} : memref<16x32xf32, #tpu.memory_space<vmem>>, vector<16x32xf32>,
    %c0_78 = arith.constant 0 : index
    %c0_79 = arith.constant 0 : index
    %382 = vector.load %arg13[%c0_78, %c0_79] : memref<16x32xf32, #tpu.memory_space<vmem>>, vector<16x32xf32>
    tpu.vector_store %arg13[%c0_78, %c0_79], %376 {strides = array<i32>} : memref<16x32xf32, #tpu.memory_space<vmem>>, vector<16x32xf32>,
    %c0_i32_80 = arith.constant 0 : i32
    %383 = arith.cmpi eq, %arg1, %c0_i32_80 : i32
    %384 = arith.extui %383 : i1 to i32
    %c0_i32_81 = arith.constant 0 : i32
    %385 = arith.cmpi ne, %384, %c0_i32_81 : i32
    scf.if %385 {
      %c0_82 = arith.constant 0 : index
      %c0_83 = arith.constant 0 : index
      %386 = vector.load %arg7[%c0_82, %c0_83] : memref<64x128xbf16, #tpu.memory_space<vmem>>, vector<64x128xbf16>
      %387 = arith.truncf %355 : vector<16x32xf32> to vector<16x32xbf16>
      %388 = vector.extract_strided_slice %386 {offsets = [0, 0], sizes = [32, 128], strides = [1, 1]} : vector<64x128xbf16> to vector<32x128xbf16>
      %cst_84 = arith.constant dense<0.000000e+00> : vector<16x128xf32>
      %389 = tpu.matmul %387, %388, %cst_84 {dimension_numbers = #tpu.dot_dimension_numbers<[1], [0], [0], [1], [0, 0, 1, 1], [], []>} : vector<16x32xbf16>, vector<32x128xbf16>, vector<16x128xf32> -> vector<16x128xf32>
      %390 = arith.truncf %378 : vector<16x32xf32> to vector<16x32xbf16>
      %391 = vector.extract_strided_slice %386 {offsets = [32, 0], sizes = [32, 128], strides = [1, 1]} : vector<64x128xbf16> to vector<32x128xbf16>
      %cst_85 = arith.constant dense<0.000000e+00> : vector<16x128xf32>
      %392 = tpu.matmul %390, %391, %cst_85 {dimension_numbers = #tpu.dot_dimension_numbers<[1], [0], [0], [1], [0, 0, 1, 1], [], []>} : vector<16x32xbf16>, vector<32x128xbf16>, vector<16x128xf32> -> vector<16x128xf32>
      %393 = arith.addf %389, %392 : vector<16x128xf32>
      %c0_86 = arith.constant 0 : index
      %c0_87 = arith.constant 0 : index
      %394 = vector.load %arg8[%c0_86, %c0_87] : memref<1x128xf32, #tpu.memory_space<vmem>>, vector<1x128xf32>
      %395 = vector.broadcast %394 : vector<1x128xf32> to vector<16x128xf32>
      %396 = arith.addf %393, %395 : vector<16x128xf32>
      %c0_88 = arith.constant 0 : index
      %c0_89 = arith.constant 0 : index
      %397 = vector.load %arg9[%c0_88, %c0_89] : memref<16x128xf32, #tpu.memory_space<vmem>>, vector<16x128xf32>
      tpu.vector_store %arg9[%c0_88, %c0_89], %396 {strides = array<i32>} : memref<16x128xf32, #tpu.memory_space<vmem>>, vector<16x128xf32>,
    } else {
    }
    return
  }
  func.func @transform_0(%arg0: i32, %arg1: i32) -> (i32, i32, i32) {
    %c0_i32 = arith.constant 0 : i32
    %c0_i32_0 = arith.constant 0 : i32
    return %arg1, %arg0, %c0_i32 : i32, i32, i32
  }
  func.func @transform_1(%arg0: i32, %arg1: i32) -> (i32, i32) {
    %c0_i32 = arith.constant 0 : i32
    %c0_i32_0 = arith.constant 0 : i32
    %c0_i32_1 = arith.constant 0 : i32
    return %c0_i32, %c0_i32_0 : i32, i32
  }
  func.func @transform_2(%arg0: i32, %arg1: i32) -> (i32, i32) {
    %c0_i32 = arith.constant 0 : i32
    %c0_i32_0 = arith.constant 0 : i32
    %c0_i32_1 = arith.constant 0 : i32
    return %c0_i32, %c0_i32_0 : i32, i32
  }
  func.func @transform_3(%arg0: i32, %arg1: i32) -> (i32, i32) {
    %c0_i32 = arith.constant 0 : i32
    %c0_i32_0 = arith.constant 0 : i32
    %c0_i32_1 = arith.constant 0 : i32
    return %c0_i32, %c0_i32_0 : i32, i32
  }
  func.func @transform_4(%arg0: i32, %arg1: i32) -> (i32, i32) {
    %c0_i32 = arith.constant 0 : i32
    %c0_i32_0 = arith.constant 0 : i32
    %c0_i32_1 = arith.constant 0 : i32
    return %c0_i32, %c0_i32_0 : i32, i32
  }
  func.func @transform_5(%arg0: i32, %arg1: i32) -> (i32, i32) {
    %c0_i32 = arith.constant 0 : i32
    %c0_i32_0 = arith.constant 0 : i32
    %c0_i32_1 = arith.constant 0 : i32
    return %c0_i32, %c0_i32_0 : i32, i32
  }
  func.func @transform_6(%arg0: i32, %arg1: i32) -> (i32, i32) {
    %c0_i32 = arith.constant 0 : i32
    %c0_i32_0 = arith.constant 0 : i32
    %c0_i32_1 = arith.constant 0 : i32
    return %c0_i32, %c0_i32_0 : i32, i32
  }
  func.func @transform_7(%arg0: i32, %arg1: i32) -> (i32, i32) {
    %c0_i32 = arith.constant 0 : i32
    %c0_i32_0 = arith.constant 0 : i32
    return %arg0, %c0_i32 : i32, i32
  }
}

</mosaic_0001>

<llo_original>
// kernel: tpu_custom_call.1
$region0: #{tpu_custom_call.1}
  #allocation0 [shape = 'u32[]', space=smem, size = 0x4, offset = 0x4, fixed_abs, tag = 'smem constant byte address 0x4 - core index']
  #allocation1 [shape = 'u32[144,128]{1,0:T(1,128)}', space=vmem, size = 0x12000, scoped, tag = 'internal scratch']
  #allocation2 [shape = 'f32[16,32]{1,0:T(8,128)}', space=vmem, size = 0x2000, scoped, tag = 'scratch operand']
  #allocation3 [shape = 'f32[16,32]{1,0:T(8,128)}', space=vmem, size = 0x2000, scoped, tag = 'scratch operand']
  #allocation4 [shape = 'f32[16,32]{1,0:T(8,128)}', space=vmem, size = 0x2000, scoped, tag = 'scratch operand']
  #allocation5 [shape = 'f32[16,32]{1,0:T(8,128)}', space=vmem, size = 0x2000, scoped, tag = 'scratch operand']
  %s0 = inlined_call_operand.hbm [shape: bf16[8,16,128], index: 0, kind: input, shape index: {}]
  %s1 = inlined_call_operand.hbm [shape: bf16[32,128], index: 1, kind: input, shape index: {}]
  %s2 = inlined_call_operand.hbm [shape: bf16[32,128], index: 2, kind: input, shape index: {}]
  %s3 = inlined_call_operand.hbm [shape: bf16[32,128], index: 3, kind: input, shape index: {}]
  %s4 = inlined_call_operand.vmem [shape: f32[1,128], index: 4, kind: input, shape index: {}]
  %s5 = inlined_call_operand.hbm [shape: bf16[64,128], index: 5, kind: input, shape index: {}]
  %s6 = inlined_call_operand.vmem [shape: f32[1,128], index: 6, kind: input, shape index: {}]
  %s7 = inlined_call_operand.hbm [shape: f32[16,128], index: 7, kind: output, shape index: {}]
  %s8 = sld [smem:[#allocation0]]
  $region66: #{tpu_custom_call.1} parent=0
    _
  %s10 = ssub.s32 1, %s8
  %s11 = scalar_select 0, %s10, %s8
  $region1: #{tpu_custom_call.1} parent=0
    #allocation6 [shape = 'u8[32768]{0}', space=vmem, size = 0x8000, scoped, tag = 'input window, operand 0, single buffered']
    #allocation7 [shape = 's32[1]{0}', space=sflag, size = 0x4, scoped, tag = 'scoped memory for tpu_custom_call.1']
    #allocation8 [shape = 's32[1]{0}', space=sflag, size = 0x4, scoped, tag = 'scoped memory for tpu_custom_call.1']
    #allocation9 [shape = 'u8[8192]{0}', space=vmem, size = 0x2000, scoped, tag = 'input window, operand 1, single buffered']
    #allocation10 [shape = 's32[1]{0}', space=sflag, size = 0x4, scoped, tag = 'scoped memory for tpu_custom_call.1']
    #allocation11 [shape = 'u8[8192]{0}', space=vmem, size = 0x2000, scoped, tag = 'input window, operand 2, single buffered']
    #allocation12 [shape = 'u8[8192]{0}', space=vmem, size = 0x2000, scoped, tag = 'input window, operand 3, single buffered']
    #allocation13 [shape = 's32[1]{0}', space=sflag, size = 0x4, scoped, tag = 'scoped memory for tpu_custom_call.1']
    #allocation14 [shape = 'u8[16384]{0}', space=vmem, size = 0x4000, scoped, tag = 'input window, operand 5, single buffered']
    #allocation15 [shape = 'u8[8192]{0}', space=vmem, size = 0x2000, scoped, tag = 'output window, operand 0, single buffered']
    %12 = vsyncpa [#allocation7], 0
    %13 = vsyncpa [#allocation10], 0
    %14 = vsyncpa [#allocation13], 0
    %15 = vsyncpa [#allocation8], 0
    // Predicated region
    $region2: #{tpu_custom_call.1} parent=1 // pred_check
      _
    $region3: #{tpu_custom_call.1} parent=1 // pred_check_branch
      %17 = sbr.rel (0) target = $region5
    $region4: #{tpu_custom_call.1} parent=1 // pred_region
      %s19 = ssub.s32 1024, 1024
      %20 = vsyncadd [#allocation7], %s19
      %s21 = sshll.u32 [#allocation6], 4
      %s22 = int_to_ptr.vmem [resolvable:$true] %s21
      %27 = dma.hbm_to_vmem [thread:$0]  %s0, 1024, %s22, [#allocation7], 64, 64, 4
    $region5: #{tpu_custom_call.1} parent=1 // pred_fallthru
      _
    // Predicated region
    $region6: #{tpu_custom_call.1} parent=1 // pred_check
      _
    $region7: #{tpu_custom_call.1} parent=1 // pred_check_branch
      %29 = sbr.rel (0) target = $region9
    $region8: #{tpu_custom_call.1} parent=1 // pred_region
      %s31 = ssub.s32 256, 256
      %32 = vsyncadd [#allocation10], %s31
      %s33 = sshll.u32 [#allocation9], 4
      %s34 = int_to_ptr.vmem [resolvable:$true] %s33
      %39 = dma.hbm_to_vmem [thread:$0]  %s1, 256, %s34, [#allocation10], 64, 64, 4
    $region9: #{tpu_custom_call.1} parent=1 // pred_fallthru
      _
    // Predicated region
    $region10: #{tpu_custom_call.1} parent=1 // pred_check
      _
    $region11: #{tpu_custom_call.1} parent=1 // pred_check_branch
      %41 = sbr.rel (0) target = $region13
    $region12: #{tpu_custom_call.1} parent=1 // pred_region
      %s43 = ssub.s32 256, 256
      %44 = vsyncadd [#allocation10], %s43
      %s45 = sshll.u32 [#allocation11], 4
      %s46 = int_to_ptr.vmem [resolvable:$true] %s45
      %51 = dma.hbm_to_vmem [thread:$0]  %s2, 256, %s46, [#allocation10], 64, 64, 4
    $region13: #{tpu_custom_call.1} parent=1 // pred_fallthru
      _
    // Predicated region
    $region14: #{tpu_custom_call.1} parent=1 // pred_check
      _
    $region15: #{tpu_custom_call.1} parent=1 // pred_check_branch
      %53 = sbr.rel (0) target = $region17
    $region16: #{tpu_custom_call.1} parent=1 // pred_region
      %s55 = ssub.s32 256, 256
      %56 = vsyncadd [#allocation13], %s55
      %s57 = sshll.u32 [#allocation12], 4
      %s58 = int_to_ptr.vmem [resolvable:$true] %s57
      %63 = dma.hbm_to_vmem [thread:$0]  %s3, 256, %s58, [#allocation13], 64, 64, 4
    $region17: #{tpu_custom_call.1} parent=1 // pred_fallthru
      _
    // Predicated region
    $region18: #{tpu_custom_call.1} parent=1 // pred_check
      _
    $region19: #{tpu_custom_call.1} parent=1 // pred_check_branch
      %65 = sbr.rel (0) target = $region21
    $region20: #{tpu_custom_call.1} parent=1 // pred_region
      _
    $region21: #{tpu_custom_call.1} parent=1 // pred_fallthru
      _
    // Predicated region
    $region22: #{tpu_custom_call.1} parent=1 // pred_check
      _
    $region23: #{tpu_custom_call.1} parent=1 // pred_check_branch
      %67 = sbr.rel (0) target = $region25
    $region24: #{tpu_custom_call.1} parent=1 // pred_region
      %s69 = ssub.s32 512, 512
      %70 = vsyncadd [#allocation13], %s69
      %s71 = sshll.u32 [#allocation14], 4
      %s72 = int_to_ptr.vmem [resolvable:$true] %s71
      %77 = dma.hbm_to_vmem [thread:$0]  %s5, 512, %s72, [#allocation13], 64, 64, 4
    $region25: #{tpu_custom_call.1} parent=1 // pred_fallthru
      _
    // Predicated region
    $region26: #{tpu_custom_call.1} parent=1 // pred_check
      _
    $region27: #{tpu_custom_call.1} parent=1 // pred_check_branch
      %79 = sbr.rel (0) target = $region29
    $region28: #{tpu_custom_call.1} parent=1 // pred_region
      _
    $region29: #{tpu_custom_call.1} parent=1 // pred_fallthru
      _
    // Predicated region
    $region30: #{tpu_custom_call.1} parent=1 // pred_check
      _
    $region31: #{tpu_custom_call.1} parent=1 // pred_check_branch
      %81 = sbr.rel (0) target = $region33
    $region32: #{tpu_custom_call.1} parent=1 // pred_region
      %82 = dma.done [#allocation7], 1024
    $region33: #{tpu_custom_call.1} parent=1 // pred_fallthru
      _
    // Predicated region
    $region34: #{tpu_custom_call.1} parent=1 // pred_check
      _
    $region35: #{tpu_custom_call.1} parent=1 // pred_check_branch
      %84 = sbr.rel (0) target = $region37
    $region36: #{tpu_custom_call.1} parent=1 // pred_region
      %85 = dma.done [#allocation10], 256
    $region37: #{tpu_custom_call.1} parent=1 // pred_fallthru
      _
    // Predicated region
    $region38: #{tpu_custom_call.1} parent=1 // pred_check
      _
    $region39: #{tpu_custom_call.1} parent=1 // pred_check_branch
      %87 = sbr.rel (0) target = $region41
    $region40: #{tpu_custom_call.1} parent=1 // pred_region
      %88 = dma.done [#allocation10], 256
    $region41: #{tpu_custom_call.1} parent=1 // pred_fallthru
      _
    // Predicated region
    $region42: #{tpu_custom_call.1} parent=1 // pred_check
      _
    $region43: #{tpu_custom_call.1} parent=1 // pred_check_branch
      %90 = sbr.rel (0) target = $region45
    $region44: #{tpu_custom_call.1} parent=1 // pred_region
      %91 = dma.done [#allocation13], 256
    $region45: #{tpu_custom_call.1} parent=1 // pred_fallthru
      _
    // Predicated region
    $region46: #{tpu_custom_call.1} parent=1 // pred_check
      _
    $region47: #{tpu_custom_call.1} parent=1 // pred_check_branch
      %93 = sbr.rel (0) target = $region49
    $region48: #{tpu_custom_call.1} parent=1 // pred_region
      %94 = dma.done [#allocation13], 512
    $region49: #{tpu_custom_call.1} parent=1 // pred_fallthru
      _
    %p96 = scmp.eq.s32.totalorder 0, 0
    // Predicated region
    $region50: #{tpu_custom_call.1} parent=1 // pred_check
      %p97 = pneg %p96
    $region51: #{tpu_custom_call.1} parent=1 // pred_check_branch
      %99 = sbr.rel (%p97) target = $region53
    $region52: #{tpu_custom_call.1} parent=1 // pred_region
      %vm100 = vcmask 261120
      %101 = vst.msk [vmem:[#allocation2] sm:$0xff] %vm100, 0.0
      %102 = vst.msk [vmem:[#allocation2 + $0x8] sm:$0xff] %vm100, 0.0
      %103 = vst.msk [vmem:[#allocation3] sm:$0xff] %vm100, 0.0
      %104 = vst.msk [vmem:[#allocation3 + $0x8] sm:$0xff] %vm100, 0.0
      %105 = vst.msk [vmem:[#allocation4] sm:$0xff] %vm100, 0.0
      %106 = vst.msk [vmem:[#allocation4 + $0x8] sm:$0xff] %vm100, 0.0
      %107 = vst.msk [vmem:[#allocation5] sm:$0xff] %vm100, 0.0
      %108 = vst.msk [vmem:[#allocation5 + $0x8] sm:$0xff] %vm100, 0.0
    $region53: #{tpu_custom_call.1} parent=1 // pred_fallthru
      _
    %v109 = vld [vmem:[#allocation9] sm:$0xf]
    %v110 = vld [vmem:[#allocation9 + $0x4] sm:$0xf]
    %v111 = vld [vmem:[#allocation9 + $0x8] sm:$0xf]
    %v112 = vld [vmem:[#allocation9 + $0xc] sm:$0xf]
    %v113 = vld [vmem:[#allocation11] sm:$0xf]
    %v114 = vld [vmem:[#allocation11 + $0x4] sm:$0xf]
    %v115 = vld [vmem:[#allocation11 + $0x8] sm:$0xf]
    %v116 = vld [vmem:[#allocation11 + $0xc] sm:$0xf]
    %v117 = vld [vmem:[#allocation12] sm:$0xf]
    %v118 = vld [vmem:[#allocation12 + $0x4] sm:$0xf]
    %v119 = vld [vmem:[#allocation12 + $0x8] sm:$0xf]
    %v120 = vld [vmem:[#allocation12 + $0xc] sm:$0xf]
    %v121 = vld [vmem:[%s4] sm:$0x1]
    %v122 = vld [vmem:[#allocation2] sm:$0xff]
    %v123 = vld [vmem:[#allocation2 + $0x8] sm:$0xff]
    %v124 = vld [vmem:[#allocation3] sm:$0xff]
    %v125 = vld [vmem:[#allocation3 + $0x8] sm:$0xff]
    %v126 = vld [vmem:[#allocation4] sm:$0xff]
    %v127 = vld [vmem:[#allocation4 + $0x8] sm:$0xff]
    %v128 = vld [vmem:[#allocation5] sm:$0xff]
    %v129 = vld [vmem:[#allocation5 + $0x8] sm:$0xff]
    %v130 = vld [vmem:[#allocation6] sm:$0xf]
    %v131 = vld [vmem:[#allocation6 + $0x4] sm:$0xf]
    %v132 = vunpack.c.l.bf16 %v130
    %v133 = vunpack.c.l.bf16 %v131
    %v134 = vpack.c.bf16 %v123, %v122
    %v139 = vunpack.c.l.b16 %v109
    %v140 = vunpack.c.l.b16 %v110
    %v141 = vunpack.c.l.b16 %v111
    %v142 = vunpack.c.l.b16 %v112
    %v143 = vpack.c.b16 %v140, %v139
    %v144 = vpack.c.b16 %v142, %v141
    %vm147 = vcmask 261120
    %v149 = vsel %vm147, %v134, 0
    %151 = vmatprep.subr.bf16.mxu0 0
    %152 = vmatpush1.bf16.msra.mxu0 %v143
    %153 = vmatprep.subr.bf16.mxu0 0
    %154 = vmatpush1.bf16.msra.mxu0 %v144
    %155 = vmatprep.subr.bf16.mxu0 0
    %156 = vmatpush1.bf16.msra.mxu0 0
    %157 = vmatprep.subr.bf16.mxu0 0
    %158 = vmatpush1.bf16.msra.mxu0 0
    %159 = vmatprep.subr.bf16.mxu0 0
    %160 = vmatpush1.bf16.msra.mxu0 0
    %161 = vmatprep.subr.bf16.mxu0 0
    %162 = vmatpush1.bf16.msra.mxu0 0
    %163 = vmatprep.subr.bf16.mxu0 0
    %164 = vmatpush1.bf16.msra.mxu0 0
    %165 = vmatprep.subr.bf16.mxu0 0
    %166 = vmatpush1.bf16.msra.mxu0 0
    %167 = vmatprep.subr.bf16.mxu0 0
    %168 = vmatpush1.bf16.msra.mxu0 0
    %169 = vmatprep.subr.bf16.mxu0 0
    %170 = vmatpush1.bf16.msra.mxu0 0
    %171 = vmatprep.subr.bf16.mxu0 0
    %172 = vmatpush1.bf16.msra.mxu0 0
    %173 = vmatprep.subr.bf16.mxu0 0
    %174 = vmatpush1.bf16.msra.mxu0 0
    %175 = vmatprep.subr.bf16.mxu0 0
    %176 = vmatpush1.bf16.msra.mxu0 0
    %177 = vmatprep.subr.bf16.mxu0 0
    %178 = vmatpush1.bf16.msra.mxu0 0
    %179 = vmatprep.subr.bf16.mxu0 0
    %180 = vmatpush1.bf16.msra.mxu0 0
    %181 = vmatprep.subr.bf16.mxu0 0
    %182 = vmatpush1.bf16.msra.mxu0 0
    %183 = vmatprep.mubr.bf16.mxu0 0
    %184 = vmatmul.mubr.bf16.gmra.mrb[0].mxu0 %v149
    %v185 = vpop.f32.mrb[0].mxu0
    %v186 = vadd.f32 0.0, %v185
    %v187 = vpop.f32.mrb[0].mxu0
    %v188 = vpop.f32.mrb[0].mxu0
    %v189 = vadd.f32 0.0, %v188
    %v190 = vpop.f32.mrb[0].mxu0
    %191 = vdwg.mxu0
    %v192 = vadd.f32 %v132, %v186
    %v193 = vadd.f32 %v133, %v189
    %v194 = vxor.u32 %v192, 2147483648
    %v195 = vxor.u32 %v193, 2147483648
    %v196 = vmul.f32 %v194, 1.442695
    %v197 = vpow.pop %v196
    %v198 = vmul.f32 %v195, 1.442695
    %v199 = vpow.pop %v198
    %v200 = vadd.f32 %v197, 1.0
    %v201 = vadd.f32 %v199, 1.0
    %v202 = vrcp.pop %v200
    %v203 = vmul.f32 1.0, %v202
    %v204 = vrcp.pop %v201
    %v205 = vmul.f32 1.0, %v204
    %v206 = vtanh.pop %v192
    %v207 = vtanh.pop %v193
    %210 = vrot.lane.b32.xlu0 %v124, 32
    %v211 = vpop.permute.xlu0 %210
    %212 = vrot.lane.b32.xlu0 %v125, 32
    %v213 = vpop.permute.xlu0 %212
    %v216 = vmul.f32 %v203, %v211
    %v217 = vmul.f32 %v205, %v213
    %220 = vrot.lane.b32.xlu0 %v206, 32
    %v221 = vpop.permute.xlu0 %220
    %222 = vrot.lane.b32.xlu0 %v207, 32
    %v223 = vpop.permute.xlu0 %222
    %v226 = vmul.f32 %v203, %v221
    %v227 = vmul.f32 %v205, %v223
    %230 = vrot.lane.b32.xlu0 %v226, 32
    %v231 = vpop.permute.xlu0 %230
    %232 = vrot.lane.b32.xlu0 %v227, 32
    %v233 = vpop.permute.xlu0 %232
    %v236 = vadd.f32 %v216, %v231
    %v237 = vadd.f32 %v217, %v233
    %v238 = vtanh.pop %v236
    %v239 = vtanh.pop %v237
    %242 = vrot.lane.b32.xlu0 %v238, 32
    %v243 = vpop.permute.xlu0 %242
    %244 = vrot.lane.b32.xlu0 %v239, 32
    %v245 = vpop.permute.xlu0 %244
    %v248 = vmul.f32 %v203, %v243
    %v249 = vmul.f32 %v205, %v245
    %v250 = vpack.c.bf16 %v249, %v248
    %v251 = vpack.c.bf16 %v127, %v126
    %v256 = vunpack.c.l.b16 %v117
    %v257 = vunpack.c.l.b16 %v118
    %v258 = vunpack.c.l.b16 %v119
    %v259 = vunpack.c.l.b16 %v120
    %v260 = vpack.c.b16 %v257, %v256
    %v261 = vpack.c.b16 %v259, %v258
    %v265 = vsel %vm147, %v251, 0
    %267 = vmatprep.subr.bf16.mxu0 0
    %268 = vmatpush1.bf16.msra.mxu0 %v260
    %269 = vmatprep.subr.bf16.mxu0 0
    %270 = vmatpush1.bf16.msra.mxu0 %v261
    %271 = vmatprep.subr.bf16.mxu0 0
    %272 = vmatpush1.bf16.msra.mxu0 0
    %273 = vmatprep.subr.bf16.mxu0 0
    %274 = vmatpush1.bf16.msra.mxu0 0
    %275 = vmatprep.subr.bf16.mxu0 0
    %276 = vmatpush1.bf16.msra.mxu0 0
    %277 = vmatprep.subr.bf16.mxu0 0
    %278 = vmatpush1.bf16.msra.mxu0 0
    %279 = vmatprep.subr.bf16.mxu0 0
    %280 = vmatpush1.bf16.msra.mxu0 0
    %281 = vmatprep.subr.bf16.mxu0 0
    %282 = vmatpush1.bf16.msra.mxu0 0
    %283 = vmatprep.subr.bf16.mxu0 0
    %284 = vmatpush1.bf16.msra.mxu0 0
    %285 = vmatprep.subr.bf16.mxu0 0
    %286 = vmatpush1.bf16.msra.mxu0 0
    %287 = vmatprep.subr.bf16.mxu0 0
    %288 = vmatpush1.bf16.msra.mxu0 0
    %289 = vmatprep.subr.bf16.mxu0 0
    %290 = vmatpush1.bf16.msra.mxu0 0
    %291 = vmatprep.subr.bf16.mxu0 0
    %292 = vmatpush1.bf16.msra.mxu0 0
    %293 = vmatprep.subr.bf16.mxu0 0
    %294 = vmatpush1.bf16.msra.mxu0 0
    %295 = vmatprep.subr.bf16.mxu0 0
    %296 = vmatpush1.bf16.msra.mxu0 0
    %297 = vmatprep.subr.bf16.mxu0 0
    %298 = vmatpush1.bf16.msra.mxu0 0
    %299 = vmatprep.mubr.bf16.mxu0 0
    %300 = vmatmul.mubr.bf16.gmra.mrb[0].mxu0 %v265
    %v301 = vpop.f32.mrb[0].mxu0
    %v302 = vadd.f32 0.0, %v301
    %v303 = vpop.f32.mrb[0].mxu0
    %v304 = vpop.f32.mrb[0].mxu0
    %v305 = vadd.f32 0.0, %v304
    %v306 = vpop.f32.mrb[0].mxu0
    %307 = vdwg.mxu0
    %309 = vrot.lane.b32.xlu0 %v250, 64
    %v310 = vpop.permute.xlu0 %309
    %v315 = vunpack.c.l.b16 %v113
    %v316 = vunpack.c.l.b16 %v114
    %v317 = vunpack.c.l.b16 %v115
    %v318 = vunpack.c.l.b16 %v116
    %v319 = vpack.c.b16 %v316, %v315
    %v320 = vpack.c.b16 %v318, %v317
    %v324 = vsel %vm147, %v310, 0
    %326 = vmatprep.subr.bf16.mxu0 0
    %327 = vmatpush1.bf16.msra.mxu0 %v319
    %328 = vmatprep.subr.bf16.mxu0 0
    %329 = vmatpush1.bf16.msra.mxu0 %v320
    %330 = vmatprep.subr.bf16.mxu0 0
    %331 = vmatpush1.bf16.msra.mxu0 0
    %332 = vmatprep.subr.bf16.mxu0 0
    %333 = vmatpush1.bf16.msra.mxu0 0
    %334 = vmatprep.subr.bf16.mxu0 0
    %335 = vmatpush1.bf16.msra.mxu0 0
    %336 = vmatprep.subr.bf16.mxu0 0
    %337 = vmatpush1.bf16.msra.mxu0 0
    %338 = vmatprep.subr.bf16.mxu0 0
    %339 = vmatpush1.bf16.msra.mxu0 0
    %340 = vmatprep.subr.bf16.mxu0 0
    %341 = vmatpush1.bf16.msra.mxu0 0
    %342 = vmatprep.subr.bf16.mxu0 0
    %343 = vmatpush1.bf16.msra.mxu0 0
    %344 = vmatprep.subr.bf16.mxu0 0
    %345 = vmatpush1.bf16.msra.mxu0 0
    %346 = vmatprep.subr.bf16.mxu0 0
    %347 = vmatpush1.bf16.msra.mxu0 0
    %348 = vmatprep.subr.bf16.mxu0 0
    %349 = vmatpush1.bf16.msra.mxu0 0
    %350 = vmatprep.subr.bf16.mxu0 0
    %351 = vmatpush1.bf16.msra.mxu0 0
    %352 = vmatprep.subr.bf16.mxu0 0
    %353 = vmatpush1.bf16.msra.mxu0 0
    %354 = vmatprep.subr.bf16.mxu0 0
    %355 = vmatpush1.bf16.msra.mxu0 0
    %356 = vmatprep.subr.bf16.mxu0 0
    %357 = vmatpush1.bf16.msra.mxu0 0
    %358 = vmatprep.mubr.bf16.mxu0 0
    %359 = vmatmul.mubr.bf16.gmra.mrb[0].mxu0 %v324
    %v360 = vpop.f32.mrb[0].mxu0
    %v361 = vadd.f32 %v302, %v360
    %v362 = vpop.f32.mrb[0].mxu0
    %v363 = vpop.f32.mrb[0].mxu0
    %v364 = vadd.f32 %v305, %v363
    %v365 = vpop.f32.mrb[0].mxu0
    %366 = vdwg.mxu0
    %v368 = vlaneseq
    %v369 = vshrl.u32 %v368, 7
    %v370 = vsub.s32 0, %v369
    %v371 = vrot.slane %v121, %v370
    %v373 = vadd.f32 %v361, %v371
    %v374 = vadd.f32 %v364, %v371
    %v375 = vxor.u32 %v373, 2147483648
    %v376 = vxor.u32 %v374, 2147483648
    %v377 = vmul.f32 %v375, 1.442695
    %v378 = vpow.pop %v377
    %v379 = vmul.f32 %v376, 1.442695
    %v380 = vpow.pop %v379
    %v381 = vadd.f32 %v378, 1.0
    %v382 = vadd.f32 %v380, 1.0
    %v383 = vrcp.pop %v381
    %v384 = vmul.f32 1.0, %v383
    %v385 = vrcp.pop %v382
    %v386 = vmul.f32 1.0, %v385
    %v387 = vtanh.pop %v373
    %v388 = vtanh.pop %v374
    %391 = vrot.lane.b32.xlu0 %v128, 32
    %v392 = vpop.permute.xlu0 %391
    %393 = vrot.lane.b32.xlu0 %v129, 32
    %v394 = vpop.permute.xlu0 %393
    %v397 = vmul.f32 %v384, %v392
    %v398 = vmul.f32 %v386, %v394
    %401 = vrot.lane.b32.xlu0 %v387, 32
    %v402 = vpop.permute.xlu0 %401
    %403 = vrot.lane.b32.xlu0 %v388, 32
    %v404 = vpop.permute.xlu0 %403
    %v407 = vmul.f32 %v384, %v402
    %v408 = vmul.f32 %v386, %v404
    %411 = vrot.lane.b32.xlu0 %v407, 32
    %v412 = vpop.permute.xlu0 %411
    %413 = vrot.lane.b32.xlu0 %v408, 32
    %v414 = vpop.permute.xlu0 %413
    %v417 = vadd.f32 %v397, %v412
    %v418 = vadd.f32 %v398, %v414
    %v419 = vtanh.pop %v417
    %v420 = vtanh.pop %v418
    %423 = vrot.lane.b32.xlu0 %v419, 32
    %v424 = vpop.permute.xlu0 %423
    %425 = vrot.lane.b32.xlu0 %v420, 32
    %v426 = vpop.permute.xlu0 %425
    %v429 = vmul.f32 %v384, %v424
    %v430 = vmul.f32 %v386, %v426
    %s431 = scalar_lea.vmem [#allocation6], 8
    %v432 = vld [vmem:[%s431] sm:$0xf]
    %v433 = vld [vmem:[%s431 + $0x4] sm:$0xf]
    %v434 = vunpack.c.l.bf16 %v432
    %v435 = vunpack.c.l.bf16 %v433
    %436 = vmatprep.subr.bf16.mxu0 0
    %437 = vmatpush1.bf16.msra.mxu0 %v143
    %438 = vmatprep.subr.bf16.mxu0 0
    %439 = vmatpush1.bf16.msra.mxu0 %v144
    %440 = vmatprep.subr.bf16.mxu0 0
    %441 = vmatpush1.bf16.msra.mxu0 0
    %442 = vmatprep.subr.bf16.mxu0 0
    %443 = vmatpush1.bf16.msra.mxu0 0
    %444 = vmatprep.subr.bf16.mxu0 0
    %445 = vmatpush1.bf16.msra.mxu0 0
    %446 = vmatprep.subr.bf16.mxu0 0
    %447 = vmatpush1.bf16.msra.mxu0 0
    %448 = vmatprep.subr.bf16.mxu0 0
    %449 = vmatpush1.bf16.msra.mxu0 0
    %450 = vmatprep.subr.bf16.mxu0 0
    %451 = vmatpush1.bf16.msra.mxu0 0
    %452 = vmatprep.subr.bf16.mxu0 0
    %453 = vmatpush1.bf16.msra.mxu0 0
    %454 = vmatprep.subr.bf16.mxu0 0
    %455 = vmatpush1.bf16.msra.mxu0 0
    %456 = vmatprep.subr.bf16.mxu0 0
    %457 = vmatpush1.bf16.msra.mxu0 0
    %458 = vmatprep.subr.bf16.mxu0 0
    %459 = vmatpush1.bf16.msra.mxu0 0
    %460 = vmatprep.subr.bf16.mxu0 0
    %461 = vmatpush1.bf16.msra.mxu0 0
    %462 = vmatprep.subr.bf16.mxu0 0
    %463 = vmatpush1.bf16.msra.mxu0 0
    %464 = vmatprep.subr.bf16.mxu0 0
    %465 = vmatpush1.bf16.msra.mxu0 0
    %466 = vmatprep.subr.bf16.mxu0 0
    %467 = vmatpush1.bf16.msra.mxu0 0
    %468 = vmatprep.mubr.bf16.mxu0 0
    %469 = vmatmul.mubr.bf16.gmra.mrb[0].mxu0 %v324
    %v470 = vpop.f32.mrb[0].mxu0
    %v471 = vadd.f32 0.0, %v470
    %v472 = vpop.f32.mrb[0].mxu0
    %v473 = vpop.f32.mrb[0].mxu0
    %v474 = vadd.f32 0.0, %v473
    %v475 = vpop.f32.mrb[0].mxu0
    %476 = vdwg.mxu0
    %v477 = vadd.f32 %v434, %v471
    %v478 = vadd.f32 %v435, %v474
    %v479 = vxor.u32 %v477, 2147483648
    %v480 = vxor.u32 %v478, 2147483648
    %v481 = vmul.f32 %v479, 1.442695
    %v482 = vpow.pop %v481
    %v483 = vmul.f32 %v480, 1.442695
    %v484 = vpow.pop %v483
    %v485 = vadd.f32 %v482, 1.0
    %v486 = vadd.f32 %v484, 1.0
    %v487 = vrcp.pop %v485
    %v488 = vmul.f32 1.0, %v487
    %v489 = vrcp.pop %v486
    %v490 = vmul.f32 1.0, %v489
    %v491 = vtanh.pop %v477
    %v492 = vtanh.pop %v478
    %v493 = vmul.f32 %v488, %v236
    %v494 = vmul.f32 %v490, %v237
    %497 = vrot.lane.b32.xlu0 %v491, 32
    %v498 = vpop.permute.xlu0 %497
    %499 = vrot.lane.b32.xlu0 %v492, 32
    %v500 = vpop.permute.xlu0 %499
    %v503 = vmul.f32 %v488, %v498
    %v504 = vmul.f32 %v490, %v500
    %507 = vrot.lane.b32.xlu0 %v503, 32
    %v508 = vpop.permute.xlu0 %507
    %509 = vrot.lane.b32.xlu0 %v504, 32
    %v510 = vpop.permute.xlu0 %509
    %v513 = vadd.f32 %v493, %v508
    %v514 = vadd.f32 %v494, %v510
    %v515 = vtanh.pop %v513
    %v516 = vtanh.pop %v514
    %519 = vrot.lane.b32.xlu0 %v515, 32
    %v520 = vpop.permute.xlu0 %519
    %521 = vrot.lane.b32.xlu0 %v516, 32
    %v522 = vpop.permute.xlu0 %521
    %v525 = vmul.f32 %v488, %v520
    %v526 = vmul.f32 %v490, %v522
    %v527 = vpack.c.bf16 %v526, %v525
    %v528 = vpack.c.bf16 %v430, %v429
    %530 = vrot.lane.b32.xlu0 %v528, 64
    %v531 = vpop.permute.xlu0 %530
    %v533 = vsel %vm147, %v531, 0
    %535 = vmatprep.subr.bf16.mxu0 0
    %536 = vmatpush1.bf16.msra.mxu0 %v260
    %537 = vmatprep.subr.bf16.mxu0 0
    %538 = vmatpush1.bf16.msra.mxu0 %v261
    %539 = vmatprep.subr.bf16.mxu0 0
    %540 = vmatpush1.bf16.msra.mxu0 0
    %541 = vmatprep.subr.bf16.mxu0 0
    %542 = vmatpush1.bf16.msra.mxu0 0
    %543 = vmatprep.subr.bf16.mxu0 0
    %544 = vmatpush1.bf16.msra.mxu0 0
    %545 = vmatprep.subr.bf16.mxu0 0
    %546 = vmatpush1.bf16.msra.mxu0 0
    %547 = vmatprep.subr.bf16.mxu0 0
    %548 = vmatpush1.bf16.msra.mxu0 0
    %549 = vmatprep.subr.bf16.mxu0 0
    %550 = vmatpush1.bf16.msra.mxu0 0
    %551 = vmatprep.subr.bf16.mxu0 0
    %552 = vmatpush1.bf16.msra.mxu0 0
    %553 = vmatprep.subr.bf16.mxu0 0
    %554 = vmatpush1.bf16.msra.mxu0 0
    %555 = vmatprep.subr.bf16.mxu0 0
    %556 = vmatpush1.bf16.msra.mxu0 0
    %557 = vmatprep.subr.bf16.mxu0 0
    %558 = vmatpush1.bf16.msra.mxu0 0
    %559 = vmatprep.subr.bf16.mxu0 0
    %560 = vmatpush1.bf16.msra.mxu0 0
    %561 = vmatprep.subr.bf16.mxu0 0
    %562 = vmatpush1.bf16.msra.mxu0 0
    %563 = vmatprep.subr.bf16.mxu0 0
    %564 = vmatpush1.bf16.msra.mxu0 0
    %565 = vmatprep.subr.bf16.mxu0 0
    %566 = vmatpush1.bf16.msra.mxu0 0
    %567 = vmatprep.mubr.bf16.mxu0 0
    %568 = vmatmul.mubr.bf16.gmra.mrb[0].mxu0 %v533
    %v569 = vpop.f32.mrb[0].mxu0
    %v570 = vadd.f32 0.0, %v569
    %v571 = vpop.f32.mrb[0].mxu0
    %v572 = vpop.f32.mrb[0].mxu0
    %v573 = vadd.f32 0.0, %v572
    %v574 = vpop.f32.mrb[0].mxu0
    %575 = vdwg.mxu0
    %577 = vrot.lane.b32.xlu0 %v527, 64
    %v578 = vpop.permute.xlu0 %577
    %v580 = vsel %vm147, %v578, 0
    %582 = vmatprep.subr.bf16.mxu0 0
    %583 = vmatpush1.bf16.msra.mxu0 %v319
    %584 = vmatprep.subr.bf16.mxu0 0
    %585 = vmatpush1.bf16.msra.mxu0 %v320
    %586 = vmatprep.subr.bf16.mxu0 0
    %587 = vmatpush1.bf16.msra.mxu0 0
    %588 = vmatprep.subr.bf16.mxu0 0
    %589 = vmatpush1.bf16.msra.mxu0 0
    %590 = vmatprep.subr.bf16.mxu0 0
    %591 = vmatpush1.bf16.msra.mxu0 0
    %592 = vmatprep.subr.bf16.mxu0 0
    %593 = vmatpush1.bf16.msra.mxu0 0
    %594 = vmatprep.subr.bf16.mxu0 0
    %595 = vmatpush1.bf16.msra.mxu0 0
    %596 = vmatprep.subr.bf16.mxu0 0
    %597 = vmatpush1.bf16.msra.mxu0 0
    %598 = vmatprep.subr.bf16.mxu0 0
    %599 = vmatpush1.bf16.msra.mxu0 0
    %600 = vmatprep.subr.bf16.mxu0 0
    %601 = vmatpush1.bf16.msra.mxu0 0
    %602 = vmatprep.subr.bf16.mxu0 0
    %603 = vmatpush1.bf16.msra.mxu0 0
    %604 = vmatprep.subr.bf16.mxu0 0
    %605 = vmatpush1.bf16.msra.mxu0 0
    %606 = vmatprep.subr.bf16.mxu0 0
    %607 = vmatpush1.bf16.msra.mxu0 0
    %608 = vmatprep.subr.bf16.mxu0 0
    %609 = vmatpush1.bf16.msra.mxu0 0
    %610 = vmatprep.subr.bf16.mxu0 0
    %611 = vmatpush1.bf16.msra.mxu0 0
    %612 = vmatprep.subr.bf16.mxu0 0
    %613 = vmatpush1.bf16.msra.mxu0 0
    %614 = vmatprep.mubr.bf16.mxu0 0
    %615 = vmatmul.mubr.bf16.gmra.mrb[0].mxu0 %v580
    %v616 = vpop.f32.mrb[0].mxu0
    %v617 = vadd.f32 %v570, %v616
    %v618 = vpop.f32.mrb[0].mxu0
    %v619 = vpop.f32.mrb[0].mxu0
    %v620 = vadd.f32 %v573, %v619
    %v621 = vpop.f32.mrb[0].mxu0
    %622 = vdwg.mxu0
    %v623 = vadd.f32 %v617, %v371
    %v624 = vadd.f32 %v620, %v371
    %v625 = vxor.u32 %v623, 2147483648
    %v626 = vxor.u32 %v624, 2147483648
    %v627 = vmul.f32 %v625, 1.442695
    %v628 = vpow.pop %v627
    %v629 = vmul.f32 %v626, 1.442695
    %v630 = vpow.pop %v629
    %v631 = vadd.f32 %v628, 1.0
    %v632 = vadd.f32 %v630, 1.0
    %v633 = vrcp.pop %v631
    %v634 = vmul.f32 1.0, %v633
    %v635 = vrcp.pop %v632
    %v636 = vmul.f32 1.0, %v635
    %v637 = vtanh.pop %v623
    %v638 = vtanh.pop %v624
    %v639 = vmul.f32 %v634, %v417
    %v640 = vmul.f32 %v636, %v418
    %643 = vrot.lane.b32.xlu0 %v637, 32
    %v644 = vpop.permute.xlu0 %643
    %645 = vrot.lane.b32.xlu0 %v638, 32
    %v646 = vpop.permute.xlu0 %645
    %v649 = vmul.f32 %v634, %v644
    %v650 = vmul.f32 %v636, %v646
    %653 = vrot.lane.b32.xlu0 %v649, 32
    %v654 = vpop.permute.xlu0 %653
    %655 = vrot.lane.b32.xlu0 %v650, 32
    %v656 = vpop.permute.xlu0 %655
    %v659 = vadd.f32 %v639, %v654
    %v660 = vadd.f32 %v640, %v656
    %v661 = vtanh.pop %v659
    %v662 = vtanh.pop %v660
    %665 = vrot.lane.b32.xlu0 %v661, 32
    %v666 = vpop.permute.xlu0 %665
    %667 = vrot.lane.b32.xlu0 %v662, 32
    %v668 = vpop.permute.xlu0 %667
    %v671 = vmul.f32 %v634, %v666
    %v672 = vmul.f32 %v636, %v668
    %s673 = scalar_lea.vmem [#allocation6], 16
    %v674 = vld [vmem:[%s673] sm:$0xf]
    %v675 = vld [vmem:[%s673 + $0x4] sm:$0xf]
    %v676 = vunpack.c.l.bf16 %v674
    %v677 = vunpack.c.l.bf16 %v675
    %678 = vmatprep.subr.bf16.mxu0 0
    %679 = vmatpush1.bf16.msra.mxu0 %v143
    %680 = vmatprep.subr.bf16.mxu0 0
    %681 = vmatpush1.bf16.msra.mxu0 %v144
    %682 = vmatprep.subr.bf16.mxu0 0
    %683 = vmatpush1.bf16.msra.mxu0 0
    %684 = vmatprep.subr.bf16.mxu0 0
    %685 = vmatpush1.bf16.msra.mxu0 0
    %686 = vmatprep.subr.bf16.mxu0 0
    %687 = vmatpush1.bf16.msra.mxu0 0
    %688 = vmatprep.subr.bf16.mxu0 0
    %689 = vmatpush1.bf16.msra.mxu0 0
    %690 = vmatprep.subr.bf16.mxu0 0
    %691 = vmatpush1.bf16.msra.mxu0 0
    %692 = vmatprep.subr.bf16.mxu0 0
    %693 = vmatpush1.bf16.msra.mxu0 0
    %694 = vmatprep.subr.bf16.mxu0 0
    %695 = vmatpush1.bf16.msra.mxu0 0
    %696 = vmatprep.subr.bf16.mxu0 0
    %697 = vmatpush1.bf16.msra.mxu0 0
    %698 = vmatprep.subr.bf16.mxu0 0
    %699 = vmatpush1.bf16.msra.mxu0 0
    %700 = vmatprep.subr.bf16.mxu0 0
    %701 = vmatpush1.bf16.msra.mxu0 0
    %702 = vmatprep.subr.bf16.mxu0 0
    %703 = vmatpush1.bf16.msra.mxu0 0
    %704 = vmatprep.subr.bf16.mxu0 0
    %705 = vmatpush1.bf16.msra.mxu0 0
    %706 = vmatprep.subr.bf16.mxu0 0
    %707 = vmatpush1.bf16.msra.mxu0 0
    %708 = vmatprep.subr.bf16.mxu0 0
    %709 = vmatpush1.bf16.msra.mxu0 0
    %710 = vmatprep.mubr.bf16.mxu0 0
    %711 = vmatmul.mubr.bf16.gmra.mrb[0].mxu0 %v580
    %v712 = vpop.f32.mrb[0].mxu0
    %v713 = vadd.f32 0.0, %v712
    %v714 = vpop.f32.mrb[0].mxu0
    %v715 = vpop.f32.mrb[0].mxu0
    %v716 = vadd.f32 0.0, %v715
    %v717 = vpop.f32.mrb[0].mxu0
    %718 = vdwg.mxu0
    %v719 = vadd.f32 %v676, %v713
    %v720 = vadd.f32 %v677, %v716
    %v721 = vxor.u32 %v719, 2147483648
    %v722 = vxor.u32 %v720, 2147483648
    %v723 = vmul.f32 %v721, 1.442695
    %v724 = vpow.pop %v723
    %v725 = vmul.f32 %v722, 1.442695
    %v726 = vpow.pop %v725
    %v727 = vadd.f32 %v724, 1.0
    %v728 = vadd.f32 %v726, 1.0
    %v729 = vrcp.pop %v727
    %v730 = vmul.f32 1.0, %v729
    %v731 = vrcp.pop %v728
    %v732 = vmul.f32 1.0, %v731
    %v733 = vtanh.pop %v719
    %v734 = vtanh.pop %v720
    %v735 = vmul.f32 %v730, %v513
    %v736 = vmul.f32 %v732, %v514
    %739 = vrot.lane.b32.xlu0 %v733, 32
    %v740 = vpop.permute.xlu0 %739
    %741 = vrot.lane.b32.xlu0 %v734, 32
    %v742 = vpop.permute.xlu0 %741
    %v745 = vmul.f32 %v730, %v740
    %v746 = vmul.f32 %v732, %v742
    %749 = vrot.lane.b32.xlu0 %v745, 32
    %v750 = vpop.permute.xlu0 %749
    %751 = vrot.lane.b32.xlu0 %v746, 32
    %v752 = vpop.permute.xlu0 %751
    %v755 = vadd.f32 %v735, %v750
    %v756 = vadd.f32 %v736, %v752
    %v757 = vtanh.pop %v755
    %v758 = vtanh.pop %v756
    %761 = vrot.lane.b32.xlu0 %v757, 32
    %v762 = vpop.permute.xlu0 %761
    %763 = vrot.lane.b32.xlu0 %v758, 32
    %v764 = vpop.permute.xlu0 %763
    %v767 = vmul.f32 %v730, %v762
    %v768 = vmul.f32 %v732, %v764
    %v769 = vpack.c.bf16 %v768, %v767
    %v770 = vpack.c.bf16 %v672, %v671
    %772 = vrot.lane.b32.xlu0 %v770, 64
    %v773 = vpop.permute.xlu0 %772
    %v775 = vsel %vm147, %v773, 0
    %777 = vmatprep.subr.bf16.mxu0 0
    %778 = vmatpush1.bf16.msra.mxu0 %v260
    %779 = vmatprep.subr.bf16.mxu0 0
    %780 = vmatpush1.bf16.msra.mxu0 %v261
    %781 = vmatprep.subr.bf16.mxu0 0
    %782 = vmatpush1.bf16.msra.mxu0 0
    %783 = vmatprep.subr.bf16.mxu0 0
    %784 = vmatpush1.bf16.msra.mxu0 0
    %785 = vmatprep.subr.bf16.mxu0 0
    %786 = vmatpush1.bf16.msra.mxu0 0
    %787 = vmatprep.subr.bf16.mxu0 0
    %788 = vmatpush1.bf16.msra.mxu0 0
    %789 = vmatprep.subr.bf16.mxu0 0
    %790 = vmatpush1.bf16.msra.mxu0 0
    %791 = vmatprep.subr.bf16.mxu0 0
    %792 = vmatpush1.bf16.msra.mxu0 0
    %793 = vmatprep.subr.bf16.mxu0 0
    %794 = vmatpush1.bf16.msra.mxu0 0
    %795 = vmatprep.subr.bf16.mxu0 0
    %796 = vmatpush1.bf16.msra.mxu0 0
    %797 = vmatprep.subr.bf16.mxu0 0
    %798 = vmatpush1.bf16.msra.mxu0 0
    %799 = vmatprep.subr.bf16.mxu0 0
    %800 = vmatpush1.bf16.msra.mxu0 0
    %801 = vmatprep.subr.bf16.mxu0 0
    %802 = vmatpush1.bf16.msra.mxu0 0
    %803 = vmatprep.subr.bf16.mxu0 0
    %804 = vmatpush1.bf16.msra.mxu0 0
    %805 = vmatprep.subr.bf16.mxu0 0
    %806 = vmatpush1.bf16.msra.mxu0 0
    %807 = vmatprep.subr.bf16.mxu0 0
    %808 = vmatpush1.bf16.msra.mxu0 0
    %809 = vmatprep.mubr.bf16.mxu0 0
    %810 = vmatmul.mubr.bf16.gmra.mrb[0].mxu0 %v775
    %v811 = vpop.f32.mrb[0].mxu0
    %v812 = vadd.f32 0.0, %v811
    %v813 = vpop.f32.mrb[0].mxu0
    %v814 = vpop.f32.mrb[0].mxu0
    %v815 = vadd.f32 0.0, %v814
    %v816 = vpop.f32.mrb[0].mxu0
    %817 = vdwg.mxu0
    %819 = vrot.lane.b32.xlu0 %v769, 64
    %v820 = vpop.permute.xlu0 %819
    %v822 = vsel %vm147, %v820, 0
    %824 = vmatprep.subr.bf16.mxu0 0
    %825 = vmatpush1.bf16.msra.mxu0 %v319
    %826 = vmatprep.subr.bf16.mxu0 0
    %827 = vmatpush1.bf16.msra.mxu0 %v320
    %828 = vmatprep.subr.bf16.mxu0 0
    %829 = vmatpush1.bf16.msra.mxu0 0
    %830 = vmatprep.subr.bf16.mxu0 0
    %831 = vmatpush1.bf16.msra.mxu0 0
    %832 = vmatprep.subr.bf16.mxu0 0
    %833 = vmatpush1.bf16.msra.mxu0 0
    %834 = vmatprep.subr.bf16.mxu0 0
    %835 = vmatpush1.bf16.msra.mxu0 0
    %836 = vmatprep.subr.bf16.mxu0 0
    %837 = vmatpush1.bf16.msra.mxu0 0
    %838 = vmatprep.subr.bf16.mxu0 0
    %839 = vmatpush1.bf16.msra.mxu0 0
    %840 = vmatprep.subr.bf16.mxu0 0
    %841 = vmatpush1.bf16.msra.mxu0 0
    %842 = vmatprep.subr.bf16.mxu0 0
    %843 = vmatpush1.bf16.msra.mxu0 0
    %844 = vmatprep.subr.bf16.mxu0 0
    %845 = vmatpush1.bf16.msra.mxu0 0
    %846 = vmatprep.subr.bf16.mxu0 0
    %847 = vmatpush1.bf16.msra.mxu0 0
    %848 = vmatprep.subr.bf16.mxu0 0
    %849 = vmatpush1.bf16.msra.mxu0 0
    %850 = vmatprep.subr.bf16.mxu0 0
    %851 = vmatpush1.bf16.msra.mxu0 0
    %852 = vmatprep.subr.bf16.mxu0 0
    %853 = vmatpush1.bf16.msra.mxu0 0
    %854 = vmatprep.subr.bf16.mxu0 0
    %855 = vmatpush1.bf16.msra.mxu0 0
    %856 = vmatprep.mubr.bf16.mxu0 0
    %857 = vmatmul.mubr.bf16.gmra.mrb[0].mxu0 %v822
    %v858 = vpop.f32.mrb[0].mxu0
    %v859 = vadd.f32 %v812, %v858
    %v860 = vpop.f32.mrb[0].mxu0
    %v861 = vpop.f32.mrb[0].mxu0
    %v862 = vadd.f32 %v815, %v861
    %v863 = vpop.f32.mrb[0].mxu0
    %864 = vdwg.mxu0
    %v865 = vadd.f32 %v859, %v371
    %v866 = vadd.f32 %v862, %v371
    %v867 = vxor.u32 %v865, 2147483648
    %v868 = vxor.u32 %v866, 2147483648
    %v869 = vmul.f32 %v867, 1.442695
    %v870 = vpow.pop %v869
    %v871 = vmul.f32 %v868, 1.442695
    %v872 = vpow.pop %v871
    %v873 = vadd.f32 %v870, 1.0
    %v874 = vadd.f32 %v872, 1.0
    %v875 = vrcp.pop %v873
    %v876 = vmul.f32 1.0, %v875
    %v877 = vrcp.pop %v874
    %v878 = vmul.f32 1.0, %v877
    %v879 = vtanh.pop %v865
    %v880 = vtanh.pop %v866
    %v881 = vmul.f32 %v876, %v659
    %v882 = vmul.f32 %v878, %v660
    %885 = vrot.lane.b32.xlu0 %v879, 32
    %v886 = vpop.permute.xlu0 %885
    %887 = vrot.lane.b32.xlu0 %v880, 32
    %v888 = vpop.permute.xlu0 %887
    %v891 = vmul.f32 %v876, %v886
    %v892 = vmul.f32 %v878, %v888
    %895 = vrot.lane.b32.xlu0 %v891, 32
    %v896 = vpop.permute.xlu0 %895
    %897 = vrot.lane.b32.xlu0 %v892, 32
    %v898 = vpop.permute.xlu0 %897
    %v901 = vadd.f32 %v881, %v896
    %v902 = vadd.f32 %v882, %v898
    %v903 = vtanh.pop %v901
    %v904 = vtanh.pop %v902
    %907 = vrot.lane.b32.xlu0 %v903, 32
    %v908 = vpop.permute.xlu0 %907
    %909 = vrot.lane.b32.xlu0 %v904, 32
    %v910 = vpop.permute.xlu0 %909
    %v913 = vmul.f32 %v876, %v908
    %v914 = vmul.f32 %v878, %v910
    %s915 = scalar_lea.vmem [#allocation6], 24
    %v916 = vld [vmem:[%s915] sm:$0xf]
    %v917 = vld [vmem:[%s915 + $0x4] sm:$0xf]
    %v918 = vunpack.c.l.bf16 %v916
    %v919 = vunpack.c.l.bf16 %v917
    %920 = vmatprep.subr.bf16.mxu0 0
    %921 = vmatpush1.bf16.msra.mxu0 %v143
    %922 = vmatprep.subr.bf16.mxu0 0
    %923 = vmatpush1.bf16.msra.mxu0 %v144
    %924 = vmatprep.subr.bf16.mxu0 0
    %925 = vmatpush1.bf16.msra.mxu0 0
    %926 = vmatprep.subr.bf16.mxu0 0
    %927 = vmatpush1.bf16.msra.mxu0 0
    %928 = vmatprep.subr.bf16.mxu0 0
    %929 = vmatpush1.bf16.msra.mxu0 0
    %930 = vmatprep.subr.bf16.mxu0 0
    %931 = vmatpush1.bf16.msra.mxu0 0
    %932 = vmatprep.subr.bf16.mxu0 0
    %933 = vmatpush1.bf16.msra.mxu0 0
    %934 = vmatprep.subr.bf16.mxu0 0
    %935 = vmatpush1.bf16.msra.mxu0 0
    %936 = vmatprep.subr.bf16.mxu0 0
    %937 = vmatpush1.bf16.msra.mxu0 0
    %938 = vmatprep.subr.bf16.mxu0 0
    %939 = vmatpush1.bf16.msra.mxu0 0
    %940 = vmatprep.subr.bf16.mxu0 0
    %941 = vmatpush1.bf16.msra.mxu0 0
    %942 = vmatprep.subr.bf16.mxu0 0
    %943 = vmatpush1.bf16.msra.mxu0 0
    %944 = vmatprep.subr.bf16.mxu0 0
    %945 = vmatpush1.bf16.msra.mxu0 0
    %946 = vmatprep.subr.bf16.mxu0 0
    %947 = vmatpush1.bf16.msra.mxu0 0
    %948 = vmatprep.subr.bf16.mxu0 0
    %949 = vmatpush1.bf16.msra.mxu0 0
    %950 = vmatprep.subr.bf16.mxu0 0
    %951 = vmatpush1.bf16.msra.mxu0 0
    %952 = vmatprep.mubr.bf16.mxu0 0
    %953 = vmatmul.mubr.bf16.gmra.mrb[0].mxu0 %v822
    %v954 = vpop.f32.mrb[0].mxu0
    %v955 = vadd.f32 0.0, %v954
    %v956 = vpop.f32.mrb[0].mxu0
    %v957 = vpop.f32.mrb[0].mxu0
    %v958 = vadd.f32 0.0, %v957
    %v959 = vpop.f32.mrb[0].mxu0
    %960 = vdwg.mxu0
    %v961 = vadd.f32 %v918, %v955
    %v962 = vadd.f32 %v919, %v958
    %v963 = vxor.u32 %v961, 2147483648
    %v964 = vxor.u32 %v962, 2147483648
    %v965 = vmul.f32 %v963, 1.442695
    %v966 = vpow.pop %v965
    %v967 = vmul.f32 %v964, 1.442695
    %v968 = vpow.pop %v967
    %v969 = vadd.f32 %v966, 1.0
    %v970 = vadd.f32 %v968, 1.0
    %v971 = vrcp.pop %v969
    %v972 = vmul.f32 1.0, %v971
    %v973 = vrcp.pop %v970
    %v974 = vmul.f32 1.0, %v973
    %v975 = vtanh.pop %v961
    %v976 = vtanh.pop %v962
    %v977 = vmul.f32 %v972, %v755
    %v978 = vmul.f32 %v974, %v756
    %981 = vrot.lane.b32.xlu0 %v975, 32
    %v982 = vpop.permute.xlu0 %981
    %983 = vrot.lane.b32.xlu0 %v976, 32
    %v984 = vpop.permute.xlu0 %983
    %v987 = vmul.f32 %v972, %v982
    %v988 = vmul.f32 %v974, %v984
    %991 = vrot.lane.b32.xlu0 %v987, 32
    %v992 = vpop.permute.xlu0 %991
    %993 = vrot.lane.b32.xlu0 %v988, 32
    %v994 = vpop.permute.xlu0 %993
    %v997 = vadd.f32 %v977, %v992
    %v998 = vadd.f32 %v978, %v994
    %v999 = vtanh.pop %v997
    %v1000 = vtanh.pop %v998
    %1003 = vrot.lane.b32.xlu0 %v999, 32
    %v1004 = vpop.permute.xlu0 %1003
    %1005 = vrot.lane.b32.xlu0 %v1000, 32
    %v1006 = vpop.permute.xlu0 %1005
    %v1009 = vmul.f32 %v972, %v1004
    %v1010 = vmul.f32 %v974, %v1006
    %v1011 = vpack.c.bf16 %v1010, %v1009
    %v1012 = vpack.c.bf16 %v914, %v913
    %1014 = vrot.lane.b32.xlu0 %v1012, 64
    %v1015 = vpop.permute.xlu0 %1014
    %v1017 = vsel %vm147, %v1015, 0
    %1019 = vmatprep.subr.bf16.mxu0 0
    %1020 = vmatpush1.bf16.msra.mxu0 %v260
    %1021 = vmatprep.subr.bf16.mxu0 0
    %1022 = vmatpush1.bf16.msra.mxu0 %v261
    %1023 = vmatprep.subr.bf16.mxu0 0
    %1024 = vmatpush1.bf16.msra.mxu0 0
    %1025 = vmatprep.subr.bf16.mxu0 0
    %1026 = vmatpush1.bf16.msra.mxu0 0
    %1027 = vmatprep.subr.bf16.mxu0 0
    %1028 = vmatpush1.bf16.msra.mxu0 0
    %1029 = vmatprep.subr.bf16.mxu0 0
    %1030 = vmatpush1.bf16.msra.mxu0 0
    %1031 = vmatprep.subr.bf16.mxu0 0
    %1032 = vmatpush1.bf16.msra.mxu0 0
    %1033 = vmatprep.subr.bf16.mxu0 0
    %1034 = vmatpush1.bf16.msra.mxu0 0
    %1035 = vmatprep.subr.bf16.mxu0 0
    %1036 = vmatpush1.bf16.msra.mxu0 0
    %1037 = vmatprep.subr.bf16.mxu0 0
    %1038 = vmatpush1.bf16.msra.mxu0 0
    %1039 = vmatprep.subr.bf16.mxu0 0
    %1040 = vmatpush1.bf16.msra.mxu0 0
    %1041 = vmatprep.subr.bf16.mxu0 0
    %1042 = vmatpush1.bf16.msra.mxu0 0
    %1043 = vmatprep.subr.bf16.mxu0 0
    %1044 = vmatpush1.bf16.msra.mxu0 0
    %1045 = vmatprep.subr.bf16.mxu0 0
    %1046 = vmatpush1.bf16.msra.mxu0 0
    %1047 = vmatprep.subr.bf16.mxu0 0
    %1048 = vmatpush1.bf16.msra.mxu0 0
    %1049 = vmatprep.subr.bf16.mxu0 0
    %1050 = vmatpush1.bf16.msra.mxu0 0
    %1051 = vmatprep.mubr.bf16.mxu0 0
    %1052 = vmatmul.mubr.bf16.gmra.mrb[0].mxu0 %v1017
    %v1053 = vpop.f32.mrb[0].mxu0
    %v1054 = vadd.f32 0.0, %v1053
    %v1055 = vpop.f32.mrb[0].mxu0
    %v1056 = vpop.f32.mrb[0].mxu0
    %v1057 = vadd.f32 0.0, %v1056
    %v1058 = vpop.f32.mrb[0].mxu0
    %1059 = vdwg.mxu0
    %1061 = vrot.lane.b32.xlu0 %v1011, 64
    %v1062 = vpop.permute.xlu0 %1061
    %v1064 = vsel %vm147, %v1062, 0
    %1066 = vmatprep.subr.bf16.mxu0 0
    %1067 = vmatpush1.bf16.msra.mxu0 %v319
    %1068 = vmatprep.subr.bf16.mxu0 0
    %1069 = vmatpush1.bf16.msra.mxu0 %v320
    %1070 = vmatprep.subr.bf16.mxu0 0
    %1071 = vmatpush1.bf16.msra.mxu0 0
    %1072 = vmatprep.subr.bf16.mxu0 0
    %1073 = vmatpush1.bf16.msra.mxu0 0
    %1074 = vmatprep.subr.bf16.mxu0 0
    %1075 = vmatpush1.bf16.msra.mxu0 0
    %1076 = vmatprep.subr.bf16.mxu0 0
    %1077 = vmatpush1.bf16.msra.mxu0 0
    %1078 = vmatprep.subr.bf16.mxu0 0
    %1079 = vmatpush1.bf16.msra.mxu0 0
    %1080 = vmatprep.subr.bf16.mxu0 0
    %1081 = vmatpush1.bf16.msra.mxu0 0
    %1082 = vmatprep.subr.bf16.mxu0 0
    %1083 = vmatpush1.bf16.msra.mxu0 0
    %1084 = vmatprep.subr.bf16.mxu0 0
    %1085 = vmatpush1.bf16.msra.mxu0 0
    %1086 = vmatprep.subr.bf16.mxu0 0
    %1087 = vmatpush1.bf16.msra.mxu0 0
    %1088 = vmatprep.subr.bf16.mxu0 0
    %1089 = vmatpush1.bf16.msra.mxu0 0
    %1090 = vmatprep.subr.bf16.mxu0 0
    %1091 = vmatpush1.bf16.msra.mxu0 0
    %1092 = vmatprep.subr.bf16.mxu0 0
    %1093 = vmatpush1.bf16.msra.mxu0 0
    %1094 = vmatprep.subr.bf16.mxu0 0
    %1095 = vmatpush1.bf16.msra.mxu0 0
    %1096 = vmatprep.subr.bf16.mxu0 0
    %1097 = vmatpush1.bf16.msra.mxu0 0
    %1098 = vmatprep.mubr.bf16.mxu0 0
    %1099 = vmatmul.mubr.bf16.gmra.mrb[0].mxu0 %v1064
    %v1100 = vpop.f32.mrb[0].mxu0
    %v1101 = vadd.f32 %v1054, %v1100
    %v1102 = vpop.f32.mrb[0].mxu0
    %v1103 = vpop.f32.mrb[0].mxu0
    %v1104 = vadd.f32 %v1057, %v1103
    %v1105 = vpop.f32.mrb[0].mxu0
    %1106 = vdwg.mxu0
    %v1107 = vadd.f32 %v1101, %v371
    %v1108 = vadd.f32 %v1104, %v371
    %v1109 = vxor.u32 %v1107, 2147483648
    %v1110 = vxor.u32 %v1108, 2147483648
    %v1111 = vmul.f32 %v1109, 1.442695
    %v1112 = vpow.pop %v1111
    %v1113 = vmul.f32 %v1110, 1.442695
    %v1114 = vpow.pop %v1113
    %v1115 = vadd.f32 %v1112, 1.0
    %v1116 = vadd.f32 %v1114, 1.0
    %v1117 = vrcp.pop %v1115
    %v1118 = vmul.f32 1.0, %v1117
    %v1119 = vrcp.pop %v1116
    %v1120 = vmul.f32 1.0, %v1119
    %v1121 = vtanh.pop %v1107
    %v1122 = vtanh.pop %v1108
    %v1123 = vmul.f32 %v1118, %v901
    %v1124 = vmul.f32 %v1120, %v902
    %1127 = vrot.lane.b32.xlu0 %v1121, 32
    %v1128 = vpop.permute.xlu0 %1127
    %1129 = vrot.lane.b32.xlu0 %v1122, 32
    %v1130 = vpop.permute.xlu0 %1129
    %v1133 = vmul.f32 %v1118, %v1128
    %v1134 = vmul.f32 %v1120, %v1130
    %1137 = vrot.lane.b32.xlu0 %v1133, 32
    %v1138 = vpop.permute.xlu0 %1137
    %1139 = vrot.lane.b32.xlu0 %v1134, 32
    %v1140 = vpop.permute.xlu0 %1139
    %v1143 = vadd.f32 %v1123, %v1138
    %v1144 = vadd.f32 %v1124, %v1140
    %v1145 = vtanh.pop %v1143
    %v1146 = vtanh.pop %v1144
    %1149 = vrot.lane.b32.xlu0 %v1145, 32
    %v1150 = vpop.permute.xlu0 %1149
    %1151 = vrot.lane.b32.xlu0 %v1146, 32
    %v1152 = vpop.permute.xlu0 %1151
    %v1155 = vmul.f32 %v1118, %v1150
    %v1156 = vmul.f32 %v1120, %v1152
    %s1157 = scalar_lea.vmem [#allocation6], 32
    %v1158 = vld [vmem:[%s1157] sm:$0xf]
    %v1159 = vld [vmem:[%s1157 + $0x4] sm:$0xf]
    %v1160 = vunpack.c.l.bf16 %v1158
    %v1161 = vunpack.c.l.bf16 %v1159
    %1162 = vmatprep.subr.bf16.mxu0 0
    %1163 = vmatpush1.bf16.msra.mxu0 %v143
    %1164 = vmatprep.subr.bf16.mxu0 0
    %1165 = vmatpush1.bf16.msra.mxu0 %v144
    %1166 = vmatprep.subr.bf16.mxu0 0
    %1167 = vmatpush1.bf16.msra.mxu0 0
    %1168 = vmatprep.subr.bf16.mxu0 0
    %1169 = vmatpush1.bf16.msra.mxu0 0
    %1170 = vmatprep.subr.bf16.mxu0 0
    %1171 = vmatpush1.bf16.msra.mxu0 0
    %1172 = vmatprep.subr.bf16.mxu0 0
    %1173 = vmatpush1.bf16.msra.mxu0 0
    %1174 = vmatprep.subr.bf16.mxu0 0
    %1175 = vmatpush1.bf16.msra.mxu0 0
    %1176 = vmatprep.subr.bf16.mxu0 0
    %1177 = vmatpush1.bf16.msra.mxu0 0
    %1178 = vmatprep.subr.bf16.mxu0 0
    %1179 = vmatpush1.bf16.msra.mxu0 0
    %1180 = vmatprep.subr.bf16.mxu0 0
    %1181 = vmatpush1.bf16.msra.mxu0 0
    %1182 = vmatprep.subr.bf16.mxu0 0
    %1183 = vmatpush1.bf16.msra.mxu0 0
    %1184 = vmatprep.subr.bf16.mxu0 0
    %1185 = vmatpush1.bf16.msra.mxu0 0
    %1186 = vmatprep.subr.bf16.mxu0 0
    %1187 = vmatpush1.bf16.msra.mxu0 0
    %1188 = vmatprep.subr.bf16.mxu0 0
    %1189 = vmatpush1.bf16.msra.mxu0 0
    %1190 = vmatprep.subr.bf16.mxu0 0
    %1191 = vmatpush1.bf16.msra.mxu0 0
    %1192 = vmatprep.subr.bf16.mxu0 0
    %1193 = vmatpush1.bf16.msra.mxu0 0
    %1194 = vmatprep.mubr.bf16.mxu0 0
    %1195 = vmatmul.mubr.bf16.gmra.mrb[0].mxu0 %v1064
    %v1196 = vpop.f32.mrb[0].mxu0
    %v1197 = vadd.f32 0.0, %v1196
    %v1198 = vpop.f32.mrb[0].mxu0
    %v1199 = vpop.f32.mrb[0].mxu0
    %v1200 = vadd.f32 0.0, %v1199
    %v1201 = vpop.f32.mrb[0].mxu0
    %1202 = vdwg.mxu0
    %v1203 = vadd.f32 %v1160, %v1197
    %v1204 = vadd.f32 %v1161, %v1200
    %v1205 = vxor.u32 %v1203, 2147483648
    %v1206 = vxor.u32 %v1204, 2147483648
    %v1207 = vmul.f32 %v1205, 1.442695
    %v1208 = vpow.pop %v1207
    %v1209 = vmul.f32 %v1206, 1.442695
    %v1210 = vpow.pop %v1209
    %v1211 = vadd.f32 %v1208, 1.0
    %v1212 = vadd.f32 %v1210, 1.0
    %v1213 = vrcp.pop %v1211
    %v1214 = vmul.f32 1.0, %v1213
    %v1215 = vrcp.pop %v1212
    %v1216 = vmul.f32 1.0, %v1215
    %v1217 = vtanh.pop %v1203
    %v1218 = vtanh.pop %v1204
    %v1219 = vmul.f32 %v1214, %v997
    %v1220 = vmul.f32 %v1216, %v998
    %1223 = vrot.lane.b32.xlu0 %v1217, 32
    %v1224 = vpop.permute.xlu0 %1223
    %1225 = vrot.lane.b32.xlu0 %v1218, 32
    %v1226 = vpop.permute.xlu0 %1225
    %v1229 = vmul.f32 %v1214, %v1224
    %v1230 = vmul.f32 %v1216, %v1226
    %1233 = vrot.lane.b32.xlu0 %v1229, 32
    %v1234 = vpop.permute.xlu0 %1233
    %1235 = vrot.lane.b32.xlu0 %v1230, 32
    %v1236 = vpop.permute.xlu0 %1235
    %v1239 = vadd.f32 %v1219, %v1234
    %v1240 = vadd.f32 %v1220, %v1236
    %v1241 = vtanh.pop %v1239
    %v1242 = vtanh.pop %v1240
    %1245 = vrot.lane.b32.xlu0 %v1241, 32
    %v1246 = vpop.permute.xlu0 %1245
    %1247 = vrot.lane.b32.xlu0 %v1242, 32
    %v1248 = vpop.permute.xlu0 %1247
    %v1251 = vmul.f32 %v1214, %v1246
    %v1252 = vmul.f32 %v1216, %v1248
    %v1253 = vpack.c.bf16 %v1252, %v1251
    %v1254 = vpack.c.bf16 %v1156, %v1155
    %1256 = vrot.lane.b32.xlu0 %v1254, 64
    %v1257 = vpop.permute.xlu0 %1256
    %v1259 = vsel %vm147, %v1257, 0
    %1261 = vmatprep.subr.bf16.mxu0 0
    %1262 = vmatpush1.bf16.msra.mxu0 %v260
    %1263 = vmatprep.subr.bf16.mxu0 0
    %1264 = vmatpush1.bf16.msra.mxu0 %v261
    %1265 = vmatprep.subr.bf16.mxu0 0
    %1266 = vmatpush1.bf16.msra.mxu0 0
    %1267 = vmatprep.subr.bf16.mxu0 0
    %1268 = vmatpush1.bf16.msra.mxu0 0
    %1269 = vmatprep.subr.bf16.mxu0 0
    %1270 = vmatpush1.bf16.msra.mxu0 0
    %1271 = vmatprep.subr.bf16.mxu0 0
    %1272 = vmatpush1.bf16.msra.mxu0 0
    %1273 = vmatprep.subr.bf16.mxu0 0
    %1274 = vmatpush1.bf16.msra.mxu0 0
    %1275 = vmatprep.subr.bf16.mxu0 0
    %1276 = vmatpush1.bf16.msra.mxu0 0
    %1277 = vmatprep.subr.bf16.mxu0 0
    %1278 = vmatpush1.bf16.msra.mxu0 0
    %1279 = vmatprep.subr.bf16.mxu0 0
    %1280 = vmatpush1.bf16.msra.mxu0 0
    %1281 = vmatprep.subr.bf16.mxu0 0
    %1282 = vmatpush1.bf16.msra.mxu0 0
    %1283 = vmatprep.subr.bf16.mxu0 0
    %1284 = vmatpush1.bf16.msra.mxu0 0
    %1285 = vmatprep.subr.bf16.mxu0 0
    %1286 = vmatpush1.bf16.msra.mxu0 0
    %1287 = vmatprep.subr.bf16.mxu0 0
    %1288 = vmatpush1.bf16.msra.mxu0 0
    %1289 = vmatprep.subr.bf16.mxu0 0
    %1290 = vmatpush1.bf16.msra.mxu0 0
    %1291 = vmatprep.subr.bf16.mxu0 0
    %1292 = vmatpush1.bf16.msra.mxu0 0
    %1293 = vmatprep.mubr.bf16.mxu0 0
    %1294 = vmatmul.mubr.bf16.gmra.mrb[0].mxu0 %v1259
    %v1295 = vpop.f32.mrb[0].mxu0
    %v1296 = vadd.f32 0.0, %v1295
    %v1297 = vpop.f32.mrb[0].mxu0
    %v1298 = vpop.f32.mrb[0].mxu0
    %v1299 = vadd.f32 0.0, %v1298
    %v1300 = vpop.f32.mrb[0].mxu0
    %1301 = vdwg.mxu0
    %1303 = vrot.lane.b32.xlu0 %v1253, 64
    %v1304 = vpop.permute.xlu0 %1303
    %v1306 = vsel %vm147, %v1304, 0
    %1308 = vmatprep.subr.bf16.mxu0 0
    %1309 = vmatpush1.bf16.msra.mxu0 %v319
    %1310 = vmatprep.subr.bf16.mxu0 0
    %1311 = vmatpush1.bf16.msra.mxu0 %v320
    %1312 = vmatprep.subr.bf16.mxu0 0
    %1313 = vmatpush1.bf16.msra.mxu0 0
    %1314 = vmatprep.subr.bf16.mxu0 0
    %1315 = vmatpush1.bf16.msra.mxu0 0
    %1316 = vmatprep.subr.bf16.mxu0 0
    %1317 = vmatpush1.bf16.msra.mxu0 0
    %1318 = vmatprep.subr.bf16.mxu0 0
    %1319 = vmatpush1.bf16.msra.mxu0 0
    %1320 = vmatprep.subr.bf16.mxu0 0
    %1321 = vmatpush1.bf16.msra.mxu0 0
    %1322 = vmatprep.subr.bf16.mxu0 0
    %1323 = vmatpush1.bf16.msra.mxu0 0
    %1324 = vmatprep.subr.bf16.mxu0 0
    %1325 = vmatpush1.bf16.msra.mxu0 0
    %1326 = vmatprep.subr.bf16.mxu0 0
    %1327 = vmatpush1.bf16.msra.mxu0 0
    %1328 = vmatprep.subr.bf16.mxu0 0
    %1329 = vmatpush1.bf16.msra.mxu0 0
    %1330 = vmatprep.subr.bf16.mxu0 0
    %1331 = vmatpush1.bf16.msra.mxu0 0
    %1332 = vmatprep.subr.bf16.mxu0 0
    %1333 = vmatpush1.bf16.msra.mxu0 0
    %1334 = vmatprep.subr.bf16.mxu0 0
    %1335 = vmatpush1.bf16.msra.mxu0 0
    %1336 = vmatprep.subr.bf16.mxu0 0
    %1337 = vmatpush1.bf16.msra.mxu0 0
    %1338 = vmatprep.subr.bf16.mxu0 0
    %1339 = vmatpush1.bf16.msra.mxu0 0
    %1340 = vmatprep.mubr.bf16.mxu0 0
    %1341 = vmatmul.mubr.bf16.gmra.mrb[0].mxu0 %v1306
    %v1342 = vpop.f32.mrb[0].mxu0
    %v1343 = vadd.f32 %v1296, %v1342
    %v1344 = vpop.f32.mrb[0].mxu0
    %v1345 = vpop.f32.mrb[0].mxu0
    %v1346 = vadd.f32 %v1299, %v1345
    %v1347 = vpop.f32.mrb[0].mxu0
    %1348 = vdwg.mxu0
    %v1349 = vadd.f32 %v1343, %v371
    %v1350 = vadd.f32 %v1346, %v371
    %v1351 = vxor.u32 %v1349, 2147483648
    %v1352 = vxor.u32 %v1350, 2147483648
    %v1353 = vmul.f32 %v1351, 1.442695
    %v1354 = vpow.pop %v1353
    %v1355 = vmul.f32 %v1352, 1.442695
    %v1356 = vpow.pop %v1355
    %v1357 = vadd.f32 %v1354, 1.0
    %v1358 = vadd.f32 %v1356, 1.0
    %v1359 = vrcp.pop %v1357
    %v1360 = vmul.f32 1.0, %v1359
    %v1361 = vrcp.pop %v1358
    %v1362 = vmul.f32 1.0, %v1361
    %v1363 = vtanh.pop %v1349
    %v1364 = vtanh.pop %v1350
    %v1365 = vmul.f32 %v1360, %v1143
    %v1366 = vmul.f32 %v1362, %v1144
    %1369 = vrot.lane.b32.xlu0 %v1363, 32
    %v1370 = vpop.permute.xlu0 %1369
    %1371 = vrot.lane.b32.xlu0 %v1364, 32
    %v1372 = vpop.permute.xlu0 %1371
    %v1375 = vmul.f32 %v1360, %v1370
    %v1376 = vmul.f32 %v1362, %v1372
    %1379 = vrot.lane.b32.xlu0 %v1375, 32
    %v1380 = vpop.permute.xlu0 %1379
    %1381 = vrot.lane.b32.xlu0 %v1376, 32
    %v1382 = vpop.permute.xlu0 %1381
    %v1385 = vadd.f32 %v1365, %v1380
    %v1386 = vadd.f32 %v1366, %v1382
    %v1387 = vtanh.pop %v1385
    %v1388 = vtanh.pop %v1386
    %1391 = vrot.lane.b32.xlu0 %v1387, 32
    %v1392 = vpop.permute.xlu0 %1391
    %1393 = vrot.lane.b32.xlu0 %v1388, 32
    %v1394 = vpop.permute.xlu0 %1393
    %v1397 = vmul.f32 %v1360, %v1392
    %v1398 = vmul.f32 %v1362, %v1394
    %s1399 = scalar_lea.vmem [#allocation6], 40
    %v1400 = vld [vmem:[%s1399] sm:$0xf]
    %v1401 = vld [vmem:[%s1399 + $0x4] sm:$0xf]
    %v1402 = vunpack.c.l.bf16 %v1400
    %v1403 = vunpack.c.l.bf16 %v1401
    %1404 = vmatprep.subr.bf16.mxu0 0
    %1405 = vmatpush1.bf16.msra.mxu0 %v143
    %1406 = vmatprep.subr.bf16.mxu0 0
    %1407 = vmatpush1.bf16.msra.mxu0 %v144
    %1408 = vmatprep.subr.bf16.mxu0 0
    %1409 = vmatpush1.bf16.msra.mxu0 0
    %1410 = vmatprep.subr.bf16.mxu0 0
    %1411 = vmatpush1.bf16.msra.mxu0 0
    %1412 = vmatprep.subr.bf16.mxu0 0
    %1413 = vmatpush1.bf16.msra.mxu0 0
    %1414 = vmatprep.subr.bf16.mxu0 0
    %1415 = vmatpush1.bf16.msra.mxu0 0
    %1416 = vmatprep.subr.bf16.mxu0 0
    %1417 = vmatpush1.bf16.msra.mxu0 0
    %1418 = vmatprep.subr.bf16.mxu0 0
    %1419 = vmatpush1.bf16.msra.mxu0 0
    %1420 = vmatprep.subr.bf16.mxu0 0
    %1421 = vmatpush1.bf16.msra.mxu0 0
    %1422 = vmatprep.subr.bf16.mxu0 0
    %1423 = vmatpush1.bf16.msra.mxu0 0
    %1424 = vmatprep.subr.bf16.mxu0 0
    %1425 = vmatpush1.bf16.msra.mxu0 0
    %1426 = vmatprep.subr.bf16.mxu0 0
    %1427 = vmatpush1.bf16.msra.mxu0 0
    %1428 = vmatprep.subr.bf16.mxu0 0
    %1429 = vmatpush1.bf16.msra.mxu0 0
    %1430 = vmatprep.subr.bf16.mxu0 0
    %1431 = vmatpush1.bf16.msra.mxu0 0
    %1432 = vmatprep.subr.bf16.mxu0 0
    %1433 = vmatpush1.bf16.msra.mxu0 0
    %1434 = vmatprep.subr.bf16.mxu0 0
    %1435 = vmatpush1.bf16.msra.mxu0 0
    %1436 = vmatprep.mubr.bf16.mxu0 0
    %1437 = vmatmul.mubr.bf16.gmra.mrb[0].mxu0 %v1306
    %v1438 = vpop.f32.mrb[0].mxu0
    %v1439 = vadd.f32 0.0, %v1438
    %v1440 = vpop.f32.mrb[0].mxu0
    %v1441 = vpop.f32.mrb[0].mxu0
    %v1442 = vadd.f32 0.0, %v1441
    %v1443 = vpop.f32.mrb[0].mxu0
    %1444 = vdwg.mxu0
    %v1445 = vadd.f32 %v1402, %v1439
    %v1446 = vadd.f32 %v1403, %v1442
    %v1447 = vxor.u32 %v1445, 2147483648
    %v1448 = vxor.u32 %v1446, 2147483648
    %v1449 = vmul.f32 %v1447, 1.442695
    %v1450 = vpow.pop %v1449
    %v1451 = vmul.f32 %v1448, 1.442695
    %v1452 = vpow.pop %v1451
    %v1453 = vadd.f32 %v1450, 1.0
    %v1454 = vadd.f32 %v1452, 1.0
    %v1455 = vrcp.pop %v1453
    %v1456 = vmul.f32 1.0, %v1455
    %v1457 = vrcp.pop %v1454
    %v1458 = vmul.f32 1.0, %v1457
    %v1459 = vtanh.pop %v1445
    %v1460 = vtanh.pop %v1446
    %v1461 = vmul.f32 %v1456, %v1239
    %v1462 = vmul.f32 %v1458, %v1240
    %1465 = vrot.lane.b32.xlu0 %v1459, 32
    %v1466 = vpop.permute.xlu0 %1465
    %1467 = vrot.lane.b32.xlu0 %v1460, 32
    %v1468 = vpop.permute.xlu0 %1467
    %v1471 = vmul.f32 %v1456, %v1466
    %v1472 = vmul.f32 %v1458, %v1468
    %1475 = vrot.lane.b32.xlu0 %v1471, 32
    %v1476 = vpop.permute.xlu0 %1475
    %1477 = vrot.lane.b32.xlu0 %v1472, 32
    %v1478 = vpop.permute.xlu0 %1477
    %v1481 = vadd.f32 %v1461, %v1476
    %v1482 = vadd.f32 %v1462, %v1478
    %v1483 = vtanh.pop %v1481
    %v1484 = vtanh.pop %v1482
    %1487 = vrot.lane.b32.xlu0 %v1483, 32
    %v1488 = vpop.permute.xlu0 %1487
    %1489 = vrot.lane.b32.xlu0 %v1484, 32
    %v1490 = vpop.permute.xlu0 %1489
    %v1493 = vmul.f32 %v1456, %v1488
    %v1494 = vmul.f32 %v1458, %v1490
    %v1495 = vpack.c.bf16 %v1494, %v1493
    %v1496 = vpack.c.bf16 %v1398, %v1397
    %1498 = vrot.lane.b32.xlu0 %v1496, 64
    %v1499 = vpop.permute.xlu0 %1498
    %v1501 = vsel %vm147, %v1499, 0
    %1503 = vmatprep.subr.bf16.mxu0 0
    %1504 = vmatpush1.bf16.msra.mxu0 %v260
    %1505 = vmatprep.subr.bf16.mxu0 0
    %1506 = vmatpush1.bf16.msra.mxu0 %v261
    %1507 = vmatprep.subr.bf16.mxu0 0
    %1508 = vmatpush1.bf16.msra.mxu0 0
    %1509 = vmatprep.subr.bf16.mxu0 0
    %1510 = vmatpush1.bf16.msra.mxu0 0
    %1511 = vmatprep.subr.bf16.mxu0 0
    %1512 = vmatpush1.bf16.msra.mxu0 0
    %1513 = vmatprep.subr.bf16.mxu0 0
    %1514 = vmatpush1.bf16.msra.mxu0 0
    %1515 = vmatprep.subr.bf16.mxu0 0
    %1516 = vmatpush1.bf16.msra.mxu0 0
    %1517 = vmatprep.subr.bf16.mxu0 0
    %1518 = vmatpush1.bf16.msra.mxu0 0
    %1519 = vmatprep.subr.bf16.mxu0 0
    %1520 = vmatpush1.bf16.msra.mxu0 0
    %1521 = vmatprep.subr.bf16.mxu0 0
    %1522 = vmatpush1.bf16.msra.mxu0 0
    %1523 = vmatprep.subr.bf16.mxu0 0
    %1524 = vmatpush1.bf16.msra.mxu0 0
    %1525 = vmatprep.subr.bf16.mxu0 0
    %1526 = vmatpush1.bf16.msra.mxu0 0
    %1527 = vmatprep.subr.bf16.mxu0 0
    %1528 = vmatpush1.bf16.msra.mxu0 0
    %1529 = vmatprep.subr.bf16.mxu0 0
    %1530 = vmatpush1.bf16.msra.mxu0 0
    %1531 = vmatprep.subr.bf16.mxu0 0
    %1532 = vmatpush1.bf16.msra.mxu0 0
    %1533 = vmatprep.subr.bf16.mxu0 0
    %1534 = vmatpush1.bf16.msra.mxu0 0
    %1535 = vmatprep.mubr.bf16.mxu0 0
    %1536 = vmatmul.mubr.bf16.gmra.mrb[0].mxu0 %v1501
    %v1537 = vpop.f32.mrb[0].mxu0
    %v1538 = vadd.f32 0.0, %v1537
    %v1539 = vpop.f32.mrb[0].mxu0
    %v1540 = vpop.f32.mrb[0].mxu0
    %v1541 = vadd.f32 0.0, %v1540
    %v1542 = vpop.f32.mrb[0].mxu0
    %1543 = vdwg.mxu0
    %1545 = vrot.lane.b32.xlu0 %v1495, 64
    %v1546 = vpop.permute.xlu0 %1545
    %v1548 = vsel %vm147, %v1546, 0
    %1550 = vmatprep.subr.bf16.mxu0 0
    %1551 = vmatpush1.bf16.msra.mxu0 %v319
    %1552 = vmatprep.subr.bf16.mxu0 0
    %1553 = vmatpush1.bf16.msra.mxu0 %v320
    %1554 = vmatprep.subr.bf16.mxu0 0
    %1555 = vmatpush1.bf16.msra.mxu0 0
    %1556 = vmatprep.subr.bf16.mxu0 0
    %1557 = vmatpush1.bf16.msra.mxu0 0
    %1558 = vmatprep.subr.bf16.mxu0 0
    %1559 = vmatpush1.bf16.msra.mxu0 0
    %1560 = vmatprep.subr.bf16.mxu0 0
    %1561 = vmatpush1.bf16.msra.mxu0 0
    %1562 = vmatprep.subr.bf16.mxu0 0
    %1563 = vmatpush1.bf16.msra.mxu0 0
    %1564 = vmatprep.subr.bf16.mxu0 0
    %1565 = vmatpush1.bf16.msra.mxu0 0
    %1566 = vmatprep.subr.bf16.mxu0 0
    %1567 = vmatpush1.bf16.msra.mxu0 0
    %1568 = vmatprep.subr.bf16.mxu0 0
    %1569 = vmatpush1.bf16.msra.mxu0 0
    %1570 = vmatprep.subr.bf16.mxu0 0
    %1571 = vmatpush1.bf16.msra.mxu0 0
    %1572 = vmatprep.subr.bf16.mxu0 0
    %1573 = vmatpush1.bf16.msra.mxu0 0
    %1574 = vmatprep.subr.bf16.mxu0 0
    %1575 = vmatpush1.bf16.msra.mxu0 0
    %1576 = vmatprep.subr.bf16.mxu0 0
    %1577 = vmatpush1.bf16.msra.mxu0 0
    %1578 = vmatprep.subr.bf16.mxu0 0
    %1579 = vmatpush1.bf16.msra.mxu0 0
    %1580 = vmatprep.subr.bf16.mxu0 0
    %1581 = vmatpush1.bf16.msra.mxu0 0
    %1582 = vmatprep.mubr.bf16.mxu0 0
    %1583 = vmatmul.mubr.bf16.gmra.mrb[0].mxu0 %v1548
    %v1584 = vpop.f32.mrb[0].mxu0
    %v1585 = vadd.f32 %v1538, %v1584
    %v1586 = vpop.f32.mrb[0].mxu0
    %v1587 = vpop.f32.mrb[0].mxu0
    %v1588 = vadd.f32 %v1541, %v1587
    %v1589 = vpop.f32.mrb[0].mxu0
    %1590 = vdwg.mxu0
    %v1591 = vadd.f32 %v1585, %v371
    %v1592 = vadd.f32 %v1588, %v371
    %v1593 = vxor.u32 %v1591, 2147483648
    %v1594 = vxor.u32 %v1592, 2147483648
    %v1595 = vmul.f32 %v1593, 1.442695
    %v1596 = vpow.pop %v1595
    %v1597 = vmul.f32 %v1594, 1.442695
    %v1598 = vpow.pop %v1597
    %v1599 = vadd.f32 %v1596, 1.0
    %v1600 = vadd.f32 %v1598, 1.0
    %v1601 = vrcp.pop %v1599
    %v1602 = vmul.f32 1.0, %v1601
    %v1603 = vrcp.pop %v1600
    %v1604 = vmul.f32 1.0, %v1603
    %v1605 = vtanh.pop %v1591
    %v1606 = vtanh.pop %v1592
    %v1607 = vmul.f32 %v1602, %v1385
    %v1608 = vmul.f32 %v1604, %v1386
    %1611 = vrot.lane.b32.xlu0 %v1605, 32
    %v1612 = vpop.permute.xlu0 %1611
    %1613 = vrot.lane.b32.xlu0 %v1606, 32
    %v1614 = vpop.permute.xlu0 %1613
    %v1617 = vmul.f32 %v1602, %v1612
    %v1618 = vmul.f32 %v1604, %v1614
    %1621 = vrot.lane.b32.xlu0 %v1617, 32
    %v1622 = vpop.permute.xlu0 %1621
    %1623 = vrot.lane.b32.xlu0 %v1618, 32
    %v1624 = vpop.permute.xlu0 %1623
    %v1627 = vadd.f32 %v1607, %v1622
    %v1628 = vadd.f32 %v1608, %v1624
    %v1629 = vtanh.pop %v1627
    %v1630 = vtanh.pop %v1628
    %1633 = vrot.lane.b32.xlu0 %v1629, 32
    %v1634 = vpop.permute.xlu0 %1633
    %1635 = vrot.lane.b32.xlu0 %v1630, 32
    %v1636 = vpop.permute.xlu0 %1635
    %v1639 = vmul.f32 %v1602, %v1634
    %v1640 = vmul.f32 %v1604, %v1636
    %s1641 = scalar_lea.vmem [#allocation6], 48
    %v1642 = vld [vmem:[%s1641] sm:$0xf]
    %v1643 = vld [vmem:[%s1641 + $0x4] sm:$0xf]
    %v1644 = vunpack.c.l.bf16 %v1642
    %v1645 = vunpack.c.l.bf16 %v1643
    %1646 = vmatprep.subr.bf16.mxu0 0
    %1647 = vmatpush1.bf16.msra.mxu0 %v143
    %1648 = vmatprep.subr.bf16.mxu0 0
    %1649 = vmatpush1.bf16.msra.mxu0 %v144
    %1650 = vmatprep.subr.bf16.mxu0 0
    %1651 = vmatpush1.bf16.msra.mxu0 0
    %1652 = vmatprep.subr.bf16.mxu0 0
    %1653 = vmatpush1.bf16.msra.mxu0 0
    %1654 = vmatprep.subr.bf16.mxu0 0
    %1655 = vmatpush1.bf16.msra.mxu0 0
    %1656 = vmatprep.subr.bf16.mxu0 0
    %1657 = vmatpush1.bf16.msra.mxu0 0
    %1658 = vmatprep.subr.bf16.mxu0 0
    %1659 = vmatpush1.bf16.msra.mxu0 0
    %1660 = vmatprep.subr.bf16.mxu0 0
    %1661 = vmatpush1.bf16.msra.mxu0 0
    %1662 = vmatprep.subr.bf16.mxu0 0
    %1663 = vmatpush1.bf16.msra.mxu0 0
    %1664 = vmatprep.subr.bf16.mxu0 0
    %1665 = vmatpush1.bf16.msra.mxu0 0
    %1666 = vmatprep.subr.bf16.mxu0 0
    %1667 = vmatpush1.bf16.msra.mxu0 0
    %1668 = vmatprep.subr.bf16.mxu0 0
    %1669 = vmatpush1.bf16.msra.mxu0 0
    %1670 = vmatprep.subr.bf16.mxu0 0
    %1671 = vmatpush1.bf16.msra.mxu0 0
    %1672 = vmatprep.subr.bf16.mxu0 0
    %1673 = vmatpush1.bf16.msra.mxu0 0
    %1674 = vmatprep.subr.bf16.mxu0 0
    %1675 = vmatpush1.bf16.msra.mxu0 0
    %1676 = vmatprep.subr.bf16.mxu0 0
    %1677 = vmatpush1.bf16.msra.mxu0 0
    %1678 = vmatprep.mubr.bf16.mxu0 0
    %1679 = vmatmul.mubr.bf16.gmra.mrb[0].mxu0 %v1548
    %v1680 = vpop.f32.mrb[0].mxu0
    %v1681 = vadd.f32 0.0, %v1680
    %v1682 = vpop.f32.mrb[0].mxu0
    %v1683 = vpop.f32.mrb[0].mxu0
    %v1684 = vadd.f32 0.0, %v1683
    %v1685 = vpop.f32.mrb[0].mxu0
    %1686 = vdwg.mxu0
    %v1687 = vadd.f32 %v1644, %v1681
    %v1688 = vadd.f32 %v1645, %v1684
    %v1689 = vxor.u32 %v1687, 2147483648
    %v1690 = vxor.u32 %v1688, 2147483648
    %v1691 = vmul.f32 %v1689, 1.442695
    %v1692 = vpow.pop %v1691
    %v1693 = vmul.f32 %v1690, 1.442695
    %v1694 = vpow.pop %v1693
    %v1695 = vadd.f32 %v1692, 1.0
    %v1696 = vadd.f32 %v1694, 1.0
    %v1697 = vrcp.pop %v1695
    %v1698 = vmul.f32 1.0, %v1697
    %v1699 = vrcp.pop %v1696
    %v1700 = vmul.f32 1.0, %v1699
    %v1701 = vtanh.pop %v1687
    %v1702 = vtanh.pop %v1688
    %v1703 = vmul.f32 %v1698, %v1481
    %v1704 = vmul.f32 %v1700, %v1482
    %1707 = vrot.lane.b32.xlu0 %v1701, 32
    %v1708 = vpop.permute.xlu0 %1707
    %1709 = vrot.lane.b32.xlu0 %v1702, 32
    %v1710 = vpop.permute.xlu0 %1709
    %v1713 = vmul.f32 %v1698, %v1708
    %v1714 = vmul.f32 %v1700, %v1710
    %1717 = vrot.lane.b32.xlu0 %v1713, 32
    %v1718 = vpop.permute.xlu0 %1717
    %1719 = vrot.lane.b32.xlu0 %v1714, 32
    %v1720 = vpop.permute.xlu0 %1719
    %v1723 = vadd.f32 %v1703, %v1718
    %v1724 = vadd.f32 %v1704, %v1720
    %v1725 = vtanh.pop %v1723
    %v1726 = vtanh.pop %v1724
    %1729 = vrot.lane.b32.xlu0 %v1725, 32
    %v1730 = vpop.permute.xlu0 %1729
    %1731 = vrot.lane.b32.xlu0 %v1726, 32
    %v1732 = vpop.permute.xlu0 %1731
    %v1735 = vmul.f32 %v1698, %v1730
    %v1736 = vmul.f32 %v1700, %v1732
    %v1737 = vpack.c.bf16 %v1736, %v1735
    %v1738 = vpack.c.bf16 %v1640, %v1639
    %1740 = vrot.lane.b32.xlu0 %v1738, 64
    %v1741 = vpop.permute.xlu0 %1740
    %v1743 = vsel %vm147, %v1741, 0
    %1745 = vmatprep.subr.bf16.mxu0 0
    %1746 = vmatpush1.bf16.msra.mxu0 %v260
    %1747 = vmatprep.subr.bf16.mxu0 0
    %1748 = vmatpush1.bf16.msra.mxu0 %v261
    %1749 = vmatprep.subr.bf16.mxu0 0
    %1750 = vmatpush1.bf16.msra.mxu0 0
    %1751 = vmatprep.subr.bf16.mxu0 0
    %1752 = vmatpush1.bf16.msra.mxu0 0
    %1753 = vmatprep.subr.bf16.mxu0 0
    %1754 = vmatpush1.bf16.msra.mxu0 0
    %1755 = vmatprep.subr.bf16.mxu0 0
    %1756 = vmatpush1.bf16.msra.mxu0 0
    %1757 = vmatprep.subr.bf16.mxu0 0
    %1758 = vmatpush1.bf16.msra.mxu0 0
    %1759 = vmatprep.subr.bf16.mxu0 0
    %1760 = vmatpush1.bf16.msra.mxu0 0
    %1761 = vmatprep.subr.bf16.mxu0 0
    %1762 = vmatpush1.bf16.msra.mxu0 0
    %1763 = vmatprep.subr.bf16.mxu0 0
    %1764 = vmatpush1.bf16.msra.mxu0 0
    %1765 = vmatprep.subr.bf16.mxu0 0
    %1766 = vmatpush1.bf16.msra.mxu0 0
    %1767 = vmatprep.subr.bf16.mxu0 0
    %1768 = vmatpush1.bf16.msra.mxu0 0
    %1769 = vmatprep.subr.bf16.mxu0 0
    %1770 = vmatpush1.bf16.msra.mxu0 0
    %1771 = vmatprep.subr.bf16.mxu0 0
    %1772 = vmatpush1.bf16.msra.mxu0 0
    %1773 = vmatprep.subr.bf16.mxu0 0
    %1774 = vmatpush1.bf16.msra.mxu0 0
    %1775 = vmatprep.subr.bf16.mxu0 0
    %1776 = vmatpush1.bf16.msra.mxu0 0
    %1777 = vmatprep.mubr.bf16.mxu0 0
    %1778 = vmatmul.mubr.bf16.gmra.mrb[0].mxu0 %v1743
    %v1779 = vpop.f32.mrb[0].mxu0
    %v1780 = vadd.f32 0.0, %v1779
    %v1781 = vpop.f32.mrb[0].mxu0
    %v1782 = vpop.f32.mrb[0].mxu0
    %v1783 = vadd.f32 0.0, %v1782
    %v1784 = vpop.f32.mrb[0].mxu0
    %1785 = vdwg.mxu0
    %1787 = vrot.lane.b32.xlu0 %v1737, 64
    %v1788 = vpop.permute.xlu0 %1787
    %v1790 = vsel %vm147, %v1788, 0
    %1792 = vmatprep.subr.bf16.mxu0 0
    %1793 = vmatpush1.bf16.msra.mxu0 %v319
    %1794 = vmatprep.subr.bf16.mxu0 0
    %1795 = vmatpush1.bf16.msra.mxu0 %v320
    %1796 = vmatprep.subr.bf16.mxu0 0
    %1797 = vmatpush1.bf16.msra.mxu0 0
    %1798 = vmatprep.subr.bf16.mxu0 0
    %1799 = vmatpush1.bf16.msra.mxu0 0
    %1800 = vmatprep.subr.bf16.mxu0 0
    %1801 = vmatpush1.bf16.msra.mxu0 0
    %1802 = vmatprep.subr.bf16.mxu0 0
    %1803 = vmatpush1.bf16.msra.mxu0 0
    %1804 = vmatprep.subr.bf16.mxu0 0
    %1805 = vmatpush1.bf16.msra.mxu0 0
    %1806 = vmatprep.subr.bf16.mxu0 0
    %1807 = vmatpush1.bf16.msra.mxu0 0
    %1808 = vmatprep.subr.bf16.mxu0 0
    %1809 = vmatpush1.bf16.msra.mxu0 0
    %1810 = vmatprep.subr.bf16.mxu0 0
    %1811 = vmatpush1.bf16.msra.mxu0 0
    %1812 = vmatprep.subr.bf16.mxu0 0
    %1813 = vmatpush1.bf16.msra.mxu0 0
    %1814 = vmatprep.subr.bf16.mxu0 0
    %1815 = vmatpush1.bf16.msra.mxu0 0
    %1816 = vmatprep.subr.bf16.mxu0 0
    %1817 = vmatpush1.bf16.msra.mxu0 0
    %1818 = vmatprep.subr.bf16.mxu0 0
    %1819 = vmatpush1.bf16.msra.mxu0 0
    %1820 = vmatprep.subr.bf16.mxu0 0
    %1821 = vmatpush1.bf16.msra.mxu0 0
    %1822 = vmatprep.subr.bf16.mxu0 0
    %1823 = vmatpush1.bf16.msra.mxu0 0
    %1824 = vmatprep.mubr.bf16.mxu0 0
    %1825 = vmatmul.mubr.bf16.gmra.mrb[0].mxu0 %v1790
    %v1826 = vpop.f32.mrb[0].mxu0
    %v1827 = vadd.f32 %v1780, %v1826
    %v1828 = vpop.f32.mrb[0].mxu0
    %v1829 = vpop.f32.mrb[0].mxu0
    %v1830 = vadd.f32 %v1783, %v1829
    %v1831 = vpop.f32.mrb[0].mxu0
    %1832 = vdwg.mxu0
    %v1833 = vadd.f32 %v1827, %v371
    %v1834 = vadd.f32 %v1830, %v371
    %v1835 = vxor.u32 %v1833, 2147483648
    %v1836 = vxor.u32 %v1834, 2147483648
    %v1837 = vmul.f32 %v1835, 1.442695
    %v1838 = vpow.pop %v1837
    %v1839 = vmul.f32 %v1836, 1.442695
    %v1840 = vpow.pop %v1839
    %v1841 = vadd.f32 %v1838, 1.0
    %v1842 = vadd.f32 %v1840, 1.0
    %v1843 = vrcp.pop %v1841
    %v1844 = vmul.f32 1.0, %v1843
    %v1845 = vrcp.pop %v1842
    %v1846 = vmul.f32 1.0, %v1845
    %v1847 = vtanh.pop %v1833
    %v1848 = vtanh.pop %v1834
    %v1849 = vmul.f32 %v1844, %v1627
    %v1850 = vmul.f32 %v1846, %v1628
    %1853 = vrot.lane.b32.xlu0 %v1847, 32
    %v1854 = vpop.permute.xlu0 %1853
    %1855 = vrot.lane.b32.xlu0 %v1848, 32
    %v1856 = vpop.permute.xlu0 %1855
    %v1859 = vmul.f32 %v1844, %v1854
    %v1860 = vmul.f32 %v1846, %v1856
    %1863 = vrot.lane.b32.xlu0 %v1859, 32
    %v1864 = vpop.permute.xlu0 %1863
    %1865 = vrot.lane.b32.xlu0 %v1860, 32
    %v1866 = vpop.permute.xlu0 %1865
    %v1869 = vadd.f32 %v1849, %v1864
    %v1870 = vadd.f32 %v1850, %v1866
    %v1871 = vtanh.pop %v1869
    %v1872 = vtanh.pop %v1870
    %1875 = vrot.lane.b32.xlu0 %v1871, 32
    %v1876 = vpop.permute.xlu0 %1875
    %1877 = vrot.lane.b32.xlu0 %v1872, 32
    %v1878 = vpop.permute.xlu0 %1877
    %v1881 = vmul.f32 %v1844, %v1876
    %v1882 = vmul.f32 %v1846, %v1878
    %s1883 = scalar_lea.vmem [#allocation6], 56
    %v1884 = vld [vmem:[%s1883] sm:$0xf]
    %v1885 = vld [vmem:[%s1883 + $0x4] sm:$0xf]
    %v1886 = vunpack.c.l.bf16 %v1884
    %v1887 = vunpack.c.l.bf16 %v1885
    %1888 = vmatprep.subr.bf16.mxu0 0
    %1889 = vmatpush1.bf16.msra.mxu0 %v143
    %1890 = vmatprep.subr.bf16.mxu0 0
    %1891 = vmatpush1.bf16.msra.mxu0 %v144
    %1892 = vmatprep.subr.bf16.mxu0 0
    %1893 = vmatpush1.bf16.msra.mxu0 0
    %1894 = vmatprep.subr.bf16.mxu0 0
    %1895 = vmatpush1.bf16.msra.mxu0 0
    %1896 = vmatprep.subr.bf16.mxu0 0
    %1897 = vmatpush1.bf16.msra.mxu0 0
    %1898 = vmatprep.subr.bf16.mxu0 0
    %1899 = vmatpush1.bf16.msra.mxu0 0
    %1900 = vmatprep.subr.bf16.mxu0 0
    %1901 = vmatpush1.bf16.msra.mxu0 0
    %1902 = vmatprep.subr.bf16.mxu0 0
    %1903 = vmatpush1.bf16.msra.mxu0 0
    %1904 = vmatprep.subr.bf16.mxu0 0
    %1905 = vmatpush1.bf16.msra.mxu0 0
    %1906 = vmatprep.subr.bf16.mxu0 0
    %1907 = vmatpush1.bf16.msra.mxu0 0
    %1908 = vmatprep.subr.bf16.mxu0 0
    %1909 = vmatpush1.bf16.msra.mxu0 0
    %1910 = vmatprep.subr.bf16.mxu0 0
    %1911 = vmatpush1.bf16.msra.mxu0 0
    %1912 = vmatprep.subr.bf16.mxu0 0
    %1913 = vmatpush1.bf16.msra.mxu0 0
    %1914 = vmatprep.subr.bf16.mxu0 0
    %1915 = vmatpush1.bf16.msra.mxu0 0
    %1916 = vmatprep.subr.bf16.mxu0 0
    %1917 = vmatpush1.bf16.msra.mxu0 0
    %1918 = vmatprep.subr.bf16.mxu0 0
    %1919 = vmatpush1.bf16.msra.mxu0 0
    %1920 = vmatprep.mubr.bf16.mxu0 0
    %1921 = vmatmul.mubr.bf16.gmra.mrb[0].mxu0 %v1790
    %v1922 = vpop.f32.mrb[0].mxu0
    %v1923 = vadd.f32 0.0, %v1922
    %v1924 = vpop.f32.mrb[0].mxu0
    %v1925 = vpop.f32.mrb[0].mxu0
    %v1926 = vadd.f32 0.0, %v1925
    %v1927 = vpop.f32.mrb[0].mxu0
    %1928 = vdwg.mxu0
    %v1929 = vadd.f32 %v1886, %v1923
    %v1930 = vadd.f32 %v1887, %v1926
    %v1931 = vxor.u32 %v1929, 2147483648
    %v1932 = vxor.u32 %v1930, 2147483648
    %v1933 = vmul.f32 %v1931, 1.442695
    %v1934 = vpow.pop %v1933
    %v1935 = vmul.f32 %v1932, 1.442695
    %v1936 = vpow.pop %v1935
    %v1937 = vadd.f32 %v1934, 1.0
    %v1938 = vadd.f32 %v1936, 1.0
    %v1939 = vrcp.pop %v1937
    %v1940 = vmul.f32 1.0, %v1939
    %v1941 = vrcp.pop %v1938
    %v1942 = vmul.f32 1.0, %v1941
    %v1943 = vtanh.pop %v1929
    %v1944 = vtanh.pop %v1930
    %v1945 = vmul.f32 %v1940, %v1723
    %v1946 = vmul.f32 %v1942, %v1724
    %1949 = vrot.lane.b32.xlu0 %v1943, 32
    %v1950 = vpop.permute.xlu0 %1949
    %1951 = vrot.lane.b32.xlu0 %v1944, 32
    %v1952 = vpop.permute.xlu0 %1951
    %v1955 = vmul.f32 %v1940, %v1950
    %v1956 = vmul.f32 %v1942, %v1952
    %1959 = vrot.lane.b32.xlu0 %v1955, 32
    %v1960 = vpop.permute.xlu0 %1959
    %1961 = vrot.lane.b32.xlu0 %v1956, 32
    %v1962 = vpop.permute.xlu0 %1961
    %v1965 = vadd.f32 %v1945, %v1960
    %v1966 = vadd.f32 %v1946, %v1962
    %v1967 = vtanh.pop %v1965
    %v1968 = vtanh.pop %v1966
    %1971 = vrot.lane.b32.xlu0 %v1967, 32
    %v1972 = vpop.permute.xlu0 %1971
    %1973 = vrot.lane.b32.xlu0 %v1968, 32
    %v1974 = vpop.permute.xlu0 %1973
    %v1977 = vmul.f32 %v1940, %v1972
    %v1978 = vmul.f32 %v1942, %v1974
    %v1979 = vpack.c.bf16 %v1978, %v1977
    %v1980 = vpack.c.bf16 %v1882, %v1881
    %1982 = vrot.lane.b32.xlu0 %v1980, 64
    %v1983 = vpop.permute.xlu0 %1982
    %v1985 = vsel %vm147, %v1983, 0
    %1987 = vmatprep.subr.bf16.mxu0 0
    %1988 = vmatpush1.bf16.msra.mxu0 %v260
    %1989 = vmatprep.subr.bf16.mxu0 0
    %1990 = vmatpush1.bf16.msra.mxu0 %v261
    %1991 = vmatprep.subr.bf16.mxu0 0
    %1992 = vmatpush1.bf16.msra.mxu0 0
    %1993 = vmatprep.subr.bf16.mxu0 0
    %1994 = vmatpush1.bf16.msra.mxu0 0
    %1995 = vmatprep.subr.bf16.mxu0 0
    %1996 = vmatpush1.bf16.msra.mxu0 0
    %1997 = vmatprep.subr.bf16.mxu0 0
    %1998 = vmatpush1.bf16.msra.mxu0 0
    %1999 = vmatprep.subr.bf16.mxu0 0
    %2000 = vmatpush1.bf16.msra.mxu0 0
    %2001 = vmatprep.subr.bf16.mxu0 0
    %2002 = vmatpush1.bf16.msra.mxu0 0
    %2003 = vmatprep.subr.bf16.mxu0 0
    %2004 = vmatpush1.bf16.msra.mxu0 0
    %2005 = vmatprep.subr.bf16.mxu0 0
    %2006 = vmatpush1.bf16.msra.mxu0 0
    %2007 = vmatprep.subr.bf16.mxu0 0
    %2008 = vmatpush1.bf16.msra.mxu0 0
    %2009 = vmatprep.subr.bf16.mxu0 0
    %2010 = vmatpush1.bf16.msra.mxu0 0
    %2011 = vmatprep.subr.bf16.mxu0 0
    %2012 = vmatpush1.bf16.msra.mxu0 0
    %2013 = vmatprep.subr.bf16.mxu0 0
    %2014 = vmatpush1.bf16.msra.mxu0 0
    %2015 = vmatprep.subr.bf16.mxu0 0
    %2016 = vmatpush1.bf16.msra.mxu0 0
    %2017 = vmatprep.subr.bf16.mxu0 0
    %2018 = vmatpush1.bf16.msra.mxu0 0
    %2019 = vmatprep.mubr.bf16.mxu0 0
    %2020 = vmatmul.mubr.bf16.gmra.mrb[0].mxu0 %v1985
    %v2021 = vpop.f32.mrb[0].mxu0
    %v2022 = vadd.f32 0.0, %v2021
    %v2023 = vpop.f32.mrb[0].mxu0
    %v2024 = vpop.f32.mrb[0].mxu0
    %v2025 = vadd.f32 0.0, %v2024
    %v2026 = vpop.f32.mrb[0].mxu0
    %2027 = vdwg.mxu0
    %2029 = vrot.lane.b32.xlu0 %v1979, 64
    %v2030 = vpop.permute.xlu0 %2029
    %v2032 = vsel %vm147, %v2030, 0
    %2034 = vmatprep.subr.bf16.mxu0 0
    %2035 = vmatpush1.bf16.msra.mxu0 %v319
    %2036 = vmatprep.subr.bf16.mxu0 0
    %2037 = vmatpush1.bf16.msra.mxu0 %v320
    %2038 = vmatprep.subr.bf16.mxu0 0
    %2039 = vmatpush1.bf16.msra.mxu0 0
    %2040 = vmatprep.subr.bf16.mxu0 0
    %2041 = vmatpush1.bf16.msra.mxu0 0
    %2042 = vmatprep.subr.bf16.mxu0 0
    %2043 = vmatpush1.bf16.msra.mxu0 0
    %2044 = vmatprep.subr.bf16.mxu0 0
    %2045 = vmatpush1.bf16.msra.mxu0 0
    %2046 = vmatprep.subr.bf16.mxu0 0
    %2047 = vmatpush1.bf16.msra.mxu0 0
    %2048 = vmatprep.subr.bf16.mxu0 0
    %2049 = vmatpush1.bf16.msra.mxu0 0
    %2050 = vmatprep.subr.bf16.mxu0 0
    %2051 = vmatpush1.bf16.msra.mxu0 0
    %2052 = vmatprep.subr.bf16.mxu0 0
    %2053 = vmatpush1.bf16.msra.mxu0 0
    %2054 = vmatprep.subr.bf16.mxu0 0
    %2055 = vmatpush1.bf16.msra.mxu0 0
    %2056 = vmatprep.subr.bf16.mxu0 0
    %2057 = vmatpush1.bf16.msra.mxu0 0
    %2058 = vmatprep.subr.bf16.mxu0 0
    %2059 = vmatpush1.bf16.msra.mxu0 0
    %2060 = vmatprep.subr.bf16.mxu0 0
    %2061 = vmatpush1.bf16.msra.mxu0 0
    %2062 = vmatprep.subr.bf16.mxu0 0
    %2063 = vmatpush1.bf16.msra.mxu0 0
    %2064 = vmatprep.subr.bf16.mxu0 0
    %2065 = vmatpush1.bf16.msra.mxu0 0
    %2066 = vmatprep.mubr.bf16.mxu0 0
    %2067 = vmatmul.mubr.bf16.gmra.mrb[0].mxu0 %v2032
    %v2068 = vpop.f32.mrb[0].mxu0
    %v2069 = vadd.f32 %v2022, %v2068
    %v2070 = vpop.f32.mrb[0].mxu0
    %v2071 = vpop.f32.mrb[0].mxu0
    %v2072 = vadd.f32 %v2025, %v2071
    %v2073 = vpop.f32.mrb[0].mxu0
    %2074 = vdwg.mxu0
    %v2075 = vadd.f32 %v2069, %v371
    %v2076 = vadd.f32 %v2072, %v371
    %v2077 = vxor.u32 %v2075, 2147483648
    %v2078 = vxor.u32 %v2076, 2147483648
    %v2079 = vmul.f32 %v2077, 1.442695
    %v2080 = vpow.pop %v2079
    %v2081 = vmul.f32 %v2078, 1.442695
    %v2082 = vpow.pop %v2081
    %v2083 = vadd.f32 %v2080, 1.0
    %v2084 = vadd.f32 %v2082, 1.0
    %v2085 = vrcp.pop %v2083
    %v2086 = vmul.f32 1.0, %v2085
    %v2087 = vrcp.pop %v2084
    %v2088 = vmul.f32 1.0, %v2087
    %v2089 = vtanh.pop %v2075
    %v2090 = vtanh.pop %v2076
    %v2091 = vmul.f32 %v2086, %v1869
    %v2092 = vmul.f32 %v2088, %v1870
    %2095 = vrot.lane.b32.xlu0 %v2089, 32
    %v2096 = vpop.permute.xlu0 %2095
    %2097 = vrot.lane.b32.xlu0 %v2090, 32
    %v2098 = vpop.permute.xlu0 %2097
    %v2101 = vmul.f32 %v2086, %v2096
    %v2102 = vmul.f32 %v2088, %v2098
    %2105 = vrot.lane.b32.xlu0 %v2101, 32
    %v2106 = vpop.permute.xlu0 %2105
    %2107 = vrot.lane.b32.xlu0 %v2102, 32
    %v2108 = vpop.permute.xlu0 %2107
    %v2111 = vadd.f32 %v2091, %v2106
    %v2112 = vadd.f32 %v2092, %v2108
    %v2113 = vtanh.pop %v2111
    %v2114 = vtanh.pop %v2112
    %2117 = vrot.lane.b32.xlu0 %v2113, 32
    %v2118 = vpop.permute.xlu0 %2117
    %2119 = vrot.lane.b32.xlu0 %v2114, 32
    %v2120 = vpop.permute.xlu0 %2119
    %v2123 = vmul.f32 %v2086, %v2118
    %v2124 = vmul.f32 %v2088, %v2120
    %2127 = vrot.lane.b32.xlu0 %v1977, 64
    %v2128 = vpop.permute.xlu0 %2127
    %2129 = vrot.lane.b32.xlu0 %v1978, 64
    %v2130 = vpop.permute.xlu0 %2129
    %2133 = vst.msk [vmem:[#allocation2] sm:$0xff] %vm147, %v2128
    %2134 = vst.msk [vmem:[#allocation2 + $0x8] sm:$0xff] %vm147, %v2130
    %2137 = vrot.lane.b32.xlu0 %v1965, 96
    %v2138 = vpop.permute.xlu0 %2137
    %2139 = vrot.lane.b32.xlu0 %v1966, 96
    %v2140 = vpop.permute.xlu0 %2139
    %2143 = vst.msk [vmem:[#allocation3] sm:$0xff] %vm147, %v2138
    %2144 = vst.msk [vmem:[#allocation3 + $0x8] sm:$0xff] %vm147, %v2140
    %2147 = vrot.lane.b32.xlu0 %v2123, 64
    %v2148 = vpop.permute.xlu0 %2147
    %2149 = vrot.lane.b32.xlu0 %v2124, 64
    %v2150 = vpop.permute.xlu0 %2149
    %2153 = vst.msk [vmem:[#allocation4] sm:$0xff] %vm147, %v2148
    %2154 = vst.msk [vmem:[#allocation4 + $0x8] sm:$0xff] %vm147, %v2150
    %2157 = vrot.lane.b32.xlu0 %v2111, 96
    %v2158 = vpop.permute.xlu0 %2157
    %2159 = vrot.lane.b32.xlu0 %v2112, 96
    %v2160 = vpop.permute.xlu0 %2159
    %2163 = vst.msk [vmem:[#allocation5] sm:$0xff] %vm147, %v2158
    %2164 = vst.msk [vmem:[#allocation5 + $0x8] sm:$0xff] %vm147, %v2160
    // Predicated region
    $region54: #{tpu_custom_call.1} parent=1 // pred_check
      %p2165 = pneg %p96
    $region55: #{tpu_custom_call.1} parent=1 // pred_check_branch
      %2167 = sbr.rel (%p2165) target = $region57
    $region56: #{tpu_custom_call.1} parent=1 // pred_region
      %v2168 = vld [vmem:[#allocation14] sm:$0xf]
      %v2169 = vld [vmem:[#allocation14 + $0x4] sm:$0xf]
      %v2170 = vld [vmem:[#allocation14 + $0x8] sm:$0xf]
      %v2171 = vld [vmem:[#allocation14 + $0xc] sm:$0xf]
      %v2172 = vld [vmem:[#allocation14 + $0x10] sm:$0xf]
      %v2173 = vld [vmem:[#allocation14 + $0x14] sm:$0xf]
      %v2174 = vld [vmem:[#allocation14 + $0x18] sm:$0xf]
      %v2175 = vld [vmem:[#allocation14 + $0x1c] sm:$0xf]
      %v2176 = vpack.c.bf16 %v2124, %v2123
      %2178 = vrot.lane.b32.xlu0 %v2176, 64
      %v2179 = vpop.permute.xlu0 %2178
      %v2184 = vunpack.c.l.b16 %v2172
      %v2185 = vunpack.c.l.b16 %v2173
      %v2186 = vunpack.c.l.b16 %v2174
      %v2187 = vunpack.c.l.b16 %v2175
      %v2188 = vpack.c.b16 %v2185, %v2184
      %v2189 = vpack.c.b16 %v2187, %v2186
      %v2193 = vsel %vm147, %v2179, 0
      %2195 = vmatprep.subr.bf16.mxu0 0
      %2196 = vmatpush1.bf16.msra.mxu0 %v2188
      %2197 = vmatprep.subr.bf16.mxu0 0
      %2198 = vmatpush1.bf16.msra.mxu0 %v2189
      %2199 = vmatprep.subr.bf16.mxu0 0
      %2200 = vmatpush1.bf16.msra.mxu0 0
      %2201 = vmatprep.subr.bf16.mxu0 0
      %2202 = vmatpush1.bf16.msra.mxu0 0
      %2203 = vmatprep.subr.bf16.mxu0 0
      %2204 = vmatpush1.bf16.msra.mxu0 0
      %2205 = vmatprep.subr.bf16.mxu0 0
      %2206 = vmatpush1.bf16.msra.mxu0 0
      %2207 = vmatprep.subr.bf16.mxu0 0
      %2208 = vmatpush1.bf16.msra.mxu0 0
      %2209 = vmatprep.subr.bf16.mxu0 0
      %2210 = vmatpush1.bf16.msra.mxu0 0
      %2211 = vmatprep.subr.bf16.mxu0 0
      %2212 = vmatpush1.bf16.msra.mxu0 0
      %2213 = vmatprep.subr.bf16.mxu0 0
      %2214 = vmatpush1.bf16.msra.mxu0 0
      %2215 = vmatprep.subr.bf16.mxu0 0
      %2216 = vmatpush1.bf16.msra.mxu0 0
      %2217 = vmatprep.subr.bf16.mxu0 0
      %2218 = vmatpush1.bf16.msra.mxu0 0
      %2219 = vmatprep.subr.bf16.mxu0 0
      %2220 = vmatpush1.bf16.msra.mxu0 0
      %2221 = vmatprep.subr.bf16.mxu0 0
      %2222 = vmatpush1.bf16.msra.mxu0 0
      %2223 = vmatprep.subr.bf16.mxu0 0
      %2224 = vmatpush1.bf16.msra.mxu0 0
      %2225 = vmatprep.subr.bf16.mxu0 0
      %2226 = vmatpush1.bf16.msra.mxu0 0
      %2227 = vmatprep.mubr.bf16.mxu0 0
      %2228 = vmatmul.mubr.bf16.gmra.mrb[0].mxu0 %v2193
      %v2229 = vpop.f32.mrb[0].mxu0
      %v2230 = vadd.f32 0.0, %v2229
      %v2231 = vpop.f32.mrb[0].mxu0
      %v2232 = vpop.f32.mrb[0].mxu0
      %v2233 = vadd.f32 0.0, %v2232
      %v2234 = vpop.f32.mrb[0].mxu0
      %2235 = vdwg.mxu0
      %v2240 = vunpack.c.l.b16 %v2168
      %v2241 = vunpack.c.l.b16 %v2169
      %v2242 = vunpack.c.l.b16 %v2170
      %v2243 = vunpack.c.l.b16 %v2171
      %v2244 = vpack.c.b16 %v2241, %v2240
      %v2245 = vpack.c.b16 %v2243, %v2242
      %2248 = vmatprep.subr.bf16.mxu0 0
      %2249 = vmatpush1.bf16.msra.mxu0 %v2244
      %2250 = vmatprep.subr.bf16.mxu0 0
      %2251 = vmatpush1.bf16.msra.mxu0 %v2245
      %2252 = vmatprep.subr.bf16.mxu0 0
      %2253 = vmatpush1.bf16.msra.mxu0 0
      %2254 = vmatprep.subr.bf16.mxu0 0
      %2255 = vmatpush1.bf16.msra.mxu0 0
      %2256 = vmatprep.subr.bf16.mxu0 0
      %2257 = vmatpush1.bf16.msra.mxu0 0
      %2258 = vmatprep.subr.bf16.mxu0 0
      %2259 = vmatpush1.bf16.msra.mxu0 0
      %2260 = vmatprep.subr.bf16.mxu0 0
      %2261 = vmatpush1.bf16.msra.mxu0 0
      %2262 = vmatprep.subr.bf16.mxu0 0
      %2263 = vmatpush1.bf16.msra.mxu0 0
      %2264 = vmatprep.subr.bf16.mxu0 0
      %2265 = vmatpush1.bf16.msra.mxu0 0
      %2266 = vmatprep.subr.bf16.mxu0 0
      %2267 = vmatpush1.bf16.msra.mxu0 0
      %2268 = vmatprep.subr.bf16.mxu0 0
      %2269 = vmatpush1.bf16.msra.mxu0 0
      %2270 = vmatprep.subr.bf16.mxu0 0
      %2271 = vmatpush1.bf16.msra.mxu0 0
      %2272 = vmatprep.subr.bf16.mxu0 0
      %2273 = vmatpush1.bf16.msra.mxu0 0
      %2274 = vmatprep.subr.bf16.mxu0 0
      %2275 = vmatpush1.bf16.msra.mxu0 0
      %2276 = vmatprep.subr.bf16.mxu0 0
      %2277 = vmatpush1.bf16.msra.mxu0 0
      %2278 = vmatprep.subr.bf16.mxu0 0
      %2279 = vmatpush1.bf16.msra.mxu0 0
      %2280 = vmatprep.mubr.bf16.mxu0 0
      %2281 = vmatmul.mubr.bf16.gmra.mrb[0].mxu0 %v2032
      %v2282 = vpop.f32.mrb[0].mxu0
      %v2283 = vadd.f32 %v2230, %v2282
      %v2284 = vpop.f32.mrb[0].mxu0
      %v2285 = vpop.f32.mrb[0].mxu0
      %v2286 = vadd.f32 %v2233, %v2285
      %v2287 = vpop.f32.mrb[0].mxu0
      %2288 = vdwg.mxu0
      %v2289 = vld [vmem:[%s6] sm:$0x1]
      %v2291 = vlaneseq
      %v2292 = vshrl.u32 %v2291, 7
      %v2293 = vsub.s32 0, %v2292
      %v2294 = vrot.slane %v2289, %v2293
      %v2296 = vadd.f32 %v2283, %v2294
      %v2297 = vadd.f32 %v2286, %v2294
      %2298 = vst [vmem:[#allocation15] sm:$0xff] %v2296
      %2299 = vst [vmem:[#allocation15 + $0x8] sm:$0xff] %v2297
    $region57: #{tpu_custom_call.1} parent=1 // pred_fallthru
      _
    // Predicated region
    $region58: #{tpu_custom_call.1} parent=1 // pred_check
      _
    $region59: #{tpu_custom_call.1} parent=1 // pred_check_branch
      %2301 = sbr.rel (0) target = $region61
    $region60: #{tpu_custom_call.1} parent=1 // pred_region
      %s2303 = ssub.s32 256, 256
      %2304 = vsyncadd [#allocation8], %s2303
      %s2305 = sshll.u32 [#allocation15], 4
      %s2306 = int_to_ptr.vmem [resolvable:$true] %s2305
      %2311 = dma.vmem_to_hbm [thread:$0]  %s2306, 256, %s7, [#allocation8], 128, 128, 8
    $region61: #{tpu_custom_call.1} parent=1 // pred_fallthru
      _
    // Predicated region
    $region62: #{tpu_custom_call.1} parent=1 // pred_check
      _
    $region63: #{tpu_custom_call.1} parent=1 // pred_check_branch
      %2313 = sbr.rel (0) target = $region65
    $region64: #{tpu_custom_call.1} parent=1 // pred_region
      %2314 = dma.done [#allocation8], 256
    $region65: #{tpu_custom_call.1} parent=1 // pred_fallthru
      _
    %2315 = vsyncpa [#allocation7], 1
    %2316 = vsyncpa [#allocation10], 1
    %2317 = vsyncpa [#allocation13], 1
    %2318 = vsyncpa [#allocation8], 1

</llo_original>
